<compile_context>
chip_gen: v5e
topology: v5e:2x2
jax: 0.10.0
libtpu: 0.0.40
codegen_flags: <defaults>
</compile_context>

<pallas_src>
import functools

import jax
import jax.numpy as jnp
from jax.experimental import pallas as pl
from jax.experimental.pallas import tpu as pltpu

_LANE = 128  # TPU lane width; channel axes are padded to a multiple of this.


def _round_up(n, m):
    return ((n + m - 1) // m) * m


def _pad_last(a, target):
    pad = target - a.shape[-1]
    if pad == 0:
        return a
    return jnp.pad(a, [(0, 0)] * (a.ndim - 1) + [(0, pad)])


def _vmem_capacity_bytes():
    try:
        return int(pltpu.get_tpu_info().vmem_capacity_bytes)
    except Exception:
        return 64 * 1024 * 1024  # conservative fallback (v7x per-core VMEM)


def _largest_divisor_leq(n, cap):
    cap = max(1, min(n, cap))
    for d in range(cap, 0, -1):
        if n % d == 0:
            return d
    return 1


def _pick_rows_per_strip(Ho, stride, W, Wo, Cin_p, hid_p, Cout_p,
                         act_bytes, budget_bytes, cap_rows=32):
    """Largest divisor of Ho (<= cap_rows) whose per-step footprint fits."""
    wp = _round_up(W + 2, 8)
    best = 1
    for th in range(1, min(Ho, cap_rows) + 1):
        if Ho % th:
            continue
        th_in = stride * th
        need = (
            2 * th_in * W * Cin_p * act_bytes        # x strip (double-buffered)
            + 2 * th * Wo * Cout_p * act_bytes       # out strip (double-buffered)
            + (th_in + 2) * wp * hid_p * act_bytes   # hp scratch
            + (th_in + 2) * W * hid_p * 4            # live f32 h before cast
            + 3 * th * Wo * hid_p * 4                # acc + window temporaries
        )
        if need <= budget_bytes:
            best = th
    return best


def _inverted_residual_kernel(*refs, stride, expand, use_res):
    """One (batch, row-strip) tile per grid step; channels pre-padded to 128."""
    if expand:
        (xt_ref, xm_ref, xb_ref, w1_ref, b1_ref, wdw_ref, b2_ref,
         w3_ref, b3_ref, out_ref, hp_ref) = refs
    else:
        (xt_ref, xm_ref, xb_ref, wdw_ref, b2_ref, w3_ref, b3_ref,
         out_ref, hp_ref) = refs
        w1_ref = b1_ref = None

    _, th_in, w, _ = xm_ref.shape
    _, th_out, wo, cout_p = out_ref.shape
    rows, wp, hid_p = hp_ref.shape            # rows == th_in + 2

    s = pl.program_id(1)
    last = pl.num_programs(1) - 1

    # Strip rows plus one halo row above/below (index maps clamp at the image
    # boundary; those rows are re-zeroed in h-space below).
    x_all = jnp.concatenate([xt_ref[0], xm_ref[0], xb_ref[0]], axis=0)
    x2 = x_all.reshape(rows * w, x_all.shape[-1])          # bf16, lane-dense

    # ---- 1x1 expand conv (MXU bf16 -> f32 acc) + bias + ReLU6 (scale folded)
    if expand:
        h = jnp.dot(x2, w1_ref[...], preferred_element_type=jnp.float32)
        h = jnp.clip(h + b1_ref[...], 0.0, 6.0)
    else:
        h = x2  # MobileNetV2: hidden == Cin when expand_ratio == 1.
    h3 = h.reshape(rows, w, hid_p).astype(hp_ref.dtype)

    # ---- depthwise 3x3, padding=1 (zero padding applied in h-space) ----
    # Column halos are re-zeroed every step: both grid axes are "parallel",
    # so no cross-step scratch state may be relied upon (megacore-safe).
    hp_ref[:, 0:1, :] = jnp.zeros((rows, 1, hid_p), hp_ref.dtype)
    hp_ref[:, w + 1:wp, :] = jnp.zeros((rows, wp - w - 1, hid_p), hp_ref.dtype)
    hp_ref[:, 1:w + 1, :] = h3

    @pl.when(s == 0)             # global top image-boundary row -> zero h
    def _():
        hp_ref[0:1, :, :] = jnp.zeros((1, wp, hid_p), hp_ref.dtype)

    @pl.when(s == last)          # global bottom image-boundary row -> zero h
    def _():
        hp_ref[th_in + 1:th_in + 2, :, :] = jnp.zeros((1, wp, hid_p), hp_ref.dtype)

    acc = jnp.zeros((th_out, wo, hid_p), jnp.float32)
    for di in range(3):
        for dj in range(3):
            tap = wdw_ref[di, dj, :].reshape(1, 1, hid_p)  # f32, s2 pre-folded
            if stride == 1:
                win = hp_ref[di:di + th_out, dj:dj + wo, :]
            else:
                # Strided block: read only the th_out x wo output positions.
                win = hp_ref[pl.ds(di, th_out, stride), pl.ds(dj, wo, stride), :]
            acc = acc + win.astype(jnp.float32) * tap
    d = jnp.clip(acc.reshape(th_out * wo, hid_p) + b2_ref[...], 0.0, 6.0)

    # ---- 1x1 project conv (MXU bf16 -> f32 acc) + bias (scale folded) ----
    y = jnp.dot(d.astype(jnp.bfloat16), w3_ref[...],
                preferred_element_type=jnp.float32) + b3_ref[...]
    if use_res:
        # stride == 1 and Cin == Cout  =>  th_in == th_out, Cin_p == Cout_p.
        y = y + xm_ref[0].reshape(th_out * wo, cout_p).astype(jnp.float32)

    # Lane-dense store: last dim == Cout_p (multiple of 128) -> unmasked vst.
    out_ref[0] = y.reshape(th_out, wo, cout_p).astype(out_ref.dtype)


def inverted_residual_pallas_nhwc(x_nhwc, params, *, stride, expand_ratio,
                                  rows_per_strip=None, act_dtype=jnp.bfloat16):
    """NHWC entry point (preferred: keep the whole net NHWC, no transposes)."""
    w1, s1, b1, wdw, s2, b2, w3, s3, b3 = params
    N, H, W, Cin = x_nhwc.shape
    hidden = wdw.shape[2]
    Cout = w3.shape[1]
    expand = expand_ratio != 1
    if not expand:
        assert hidden == Cin, "expand_ratio == 1 requires hidden == in_channels"
    Ho = (H - 1) // stride + 1
    Wo = (W - 1) // stride + 1
    assert H == stride * Ho, "row-strip tiling expects H % stride == 0 for stride > 1"
    use_res = (stride == 1) and (Cin == Cout)

    Cin_p = _round_up(Cin, _LANE)
    hid_p = _round_up(hidden, _LANE)
    Cout_p = _round_up(Cout, _LANE)

    # ---- parameter prep: fold BN scales into weights in f32, pad channels ----
    s1v, b1v = s1.reshape(1, -1), b1.reshape(1, -1)
    s2v, b2v = s2.reshape(1, -1), b2.reshape(1, -1)
    s3v, b3v = s3.reshape(1, -1), b3.reshape(1, -1)

    wdw_p = _pad_last((wdw * s2v.reshape(1, 1, -1)).astype(jnp.float32), hid_p)
    b2_p = _pad_last(b2v.astype(jnp.float32), hid_p)
    w3_p = jnp.pad((w3 * s3v).astype(jnp.float32),
                   ((0, hid_p - hidden), (0, Cout_p - Cout))).astype(jnp.bfloat16)
    b3_p = _pad_last(b3v.astype(jnp.float32), Cout_p)

    # NOTE: in a full network keep activations NHWC with channels already
    # padded to 128 between blocks so this pad and the final [..., :Cout]
    # slice (two extra HBM passes per block) disappear.
    xp = _pad_last(x_nhwc, Cin_p).astype(act_dtype)

    # ---- per-generation VMEM budget and row-strip size ----
    act_bytes = jnp.dtype(act_dtype).itemsize
    vmem_cap = _vmem_capacity_bytes()
    vmem_limit = max(32 * 1024 * 1024, vmem_cap * 3 // 4)
    weight_bytes = 2 * ((Cin_p * hid_p + hid_p * Cout_p) * 2
                        + 9 * hid_p * 4 + (2 * hid_p + 2 * Cout_p) * 4)
    budget = max(vmem_limit // 2 - weight_bytes, 1 << 20)
    if rows_per_strip is None:
        TH_out = _pick_rows_per_strip(Ho, stride, W, Wo, Cin_p, hid_p, Cout_p,
                                      act_bytes, budget)
    else:
        TH_out = _largest_divisor_leq(Ho, rows_per_strip)
    TH_in = stride * TH_out
    S = Ho // TH_out
    Wp = _round_up(W + 2, 8)

    # ---- BlockSpecs ----
    x_mid_spec = pl.BlockSpec((1, TH_in, W, Cin_p), lambda n, s: (n, s, 0, 0))
    # 1-row halo blocks: row block size 1 => block index == element row index.
    x_top_spec = pl.BlockSpec(
        (1, 1, W, Cin_p), lambda n, s: (n, jnp.maximum(s * TH_in - 1, 0), 0, 0))
    x_bot_spec = pl.BlockSpec(
        (1, 1, W, Cin_p), lambda n, s: (n, jnp.minimum((s + 1) * TH_in, H - 1), 0, 0))
    dw_spec = pl.BlockSpec((3, 3, hid_p), lambda n, s: (0, 0, 0))
    mat_spec = lambda r, c: pl.BlockSpec((r, c), lambda n, s: (0, 0))
    vec_spec = lambda c: pl.BlockSpec((1, c), lambda n, s: (0, 0))

    if expand:
        w1_p = jnp.pad((w1 * s1v).astype(jnp.float32),
                       ((0, Cin_p - Cin), (0, hid_p - hidden))).astype(jnp.bfloat16)
        b1_p = _pad_last(b1v.astype(jnp.float32), hid_p)
        args = (xp, xp, xp, w1_p, b1_p, wdw_p, b2_p, w3_p, b3_p)
        in_specs = [x_top_spec, x_mid_spec, x_bot_spec,
                    mat_spec(Cin_p, hid_p), vec_spec(hid_p),
                    dw_spec, vec_spec(hid_p),
                    mat_spec(hid_p, Cout_p), vec_spec(Cout_p)]
    else:
        # expand_ratio == 1: the expand conv does not exist -> its (unused)
        # weights are not passed, so no dead HBM->VMEM DMA / VMEM buffers.
        args = (xp, xp, xp, wdw_p, b2_p, w3_p, b3_p)
        in_specs = [x_top_spec, x_mid_spec, x_bot_spec,
                    dw_spec, vec_spec(hid_p),
                    mat_spec(hid_p, Cout_p), vec_spec(Cout_p)]

    kernel = functools.partial(_inverted_residual_kernel, stride=stride,
                               expand=expand, use_res=use_res)

    out_p = pl.pallas_call(
        kernel,
        out_shape=jax.ShapeDtypeStruct((N, Ho, Wo, Cout_p), act_dtype),
        grid_spec=pltpu.PrefetchScalarGridSpec(
            num_scalar_prefetch=0,
            grid=(N, S),
            in_specs=in_specs,
            out_specs=pl.BlockSpec((1, TH_out, Wo, Cout_p),
                                   lambda n, s: (n, s, 0, 0)),
            scratch_shapes=[pltpu.VMEM((TH_in + 2, Wp, hid_p), act_dtype)],
        ),
        compiler_params=pltpu.CompilerParams(
            # Batch elements and row strips are independent -> shard across
            # TensorCores (v7x has 2 TCs; harmless on v5e/v6e).
            dimension_semantics=("parallel", "parallel"),
            vmem_limit_bytes=vmem_limit,
        ),
    )(*args)

    return out_p[..., :Cout]


def inverted_residual_pallas(x_nchw, params, *, stride, expand_ratio,
                             rows_per_strip=None):
    """PyTorch-layout (NCHW) wrapper for the demo.  In a full network keep
    activations NHWC (and channels padded) and call the NHWC entry point so
    no per-block HBM transposes / pads are paid."""
    x = jnp.transpose(x_nchw, (0, 2, 3, 1))
    y = inverted_residual_pallas_nhwc(x, params, stride=stride,
                                      expand_ratio=expand_ratio,
                                      rows_per_strip=rows_per_strip)
    return jnp.transpose(y, (0, 3, 1, 2)).astype(x_nchw.dtype)


def _reference_nchw(x_nchw, params, *, stride, expand_ratio):
    """Pure f32 reference of the PyTorch module (eval-mode BN)."""
    w1, s1, b1, wdw, s2, b2, w3, s3, b3 = params
    x = jnp.transpose(x_nchw, (0, 2, 3, 1)).astype(jnp.float32)
    N, H, W, Cin = x.shape
    Cout = w3.shape[1]
    use_res = (stride == 1) and (Cin == Cout)

    if expand_ratio != 1:
        h = jnp.einsum("nhwc,cd->nhwd", x, w1) * s1 + b1
        h = jnp.clip(h, 0.0, 6.0)
    else:
        h = x
    hp = jnp.pad(h, ((0, 0), (1, 1), (1, 1), (0, 0)))
    acc = jnp.zeros_like(h)
    for di in range(3):
        for dj in range(3):
            acc = acc + hp[:, di:di + H, dj:dj + W, :] * wdw[di, dj]
    acc = acc[:, ::stride, ::stride, :]
    d = jnp.clip(acc * s2 + b2, 0.0, 6.0)
    y = jnp.einsum("nhwd,do->nhwo", d, w3) * s3 + b3
    if use_res:
        y = y + x
    return jnp.transpose(y, (0, 3, 1, 2))


def _make_params(key, in_channels, out_channels, expand_ratio):
    hidden = round(in_channels * expand_ratio)
    eps = 1e-5
    ks = jax.random.split(key, 12)

    def bn(kg, kb, km, kv, c):
        gamma = jax.random.normal(kg, (c,), jnp.float32) * 0.1 + 1.0
        beta = jax.random.normal(kb, (c,), jnp.float32) * 0.1
        mean = jax.random.normal(km, (c,), jnp.float32) * 0.1
        var = jax.random.uniform(kv, (c,), jnp.float32, 0.5, 1.5)
        scale = gamma * jax.lax.rsqrt(var + eps)
        bias = beta - mean * scale
        return scale.reshape(1, c), bias.reshape(1, c)

    # 1x1 expand conv (PyTorch (hidden, Cin, 1, 1) -> here (Cin, hidden))
    w1 = jax.random.normal(ks[0], (in_channels, hidden), jnp.float32) * 0.1
    s1, b1 = bn(ks[1], ks[2], ks[3], ks[4], hidden)
    # depthwise 3x3 conv (PyTorch (hidden, 1, 3, 3) -> here (3, 3, hidden))
    wdw = jax.random.normal(ks[5], (3, 3, hidden), jnp.float32) * 0.1
    s2, b2 = bn(ks[6], ks[7], ks[8], ks[9], hidden)
    # 1x1 project conv (PyTorch (Cout, hidden, 1, 1) -> here (hidden, Cout))
    w3 = jax.random.normal(ks[10], (hidden, out_channels), jnp.float32) * 0.1
    s3, b3 = bn(ks[11], ks[0], ks[5], ks[10], out_channels)
    return (w1, s1, b1, wdw, s2, b2, w3, s3, b3)


if __name__ == "__main__":
    # Small shapes: batch=2, in_channels=4, out_channels=4, spatial=16x16.
    N, Cin, Cout, H, W = 2, 4, 4, 16, 16

    key = jax.random.PRNGKey(0)
    kx, kp1, kp2, kp3 = jax.random.split(key, 4)
    x = jax.random.normal(kx, (N, Cin, H, W), jnp.float32)

    # Case 1: stride=1, expand_ratio=6 (hidden=24), residual active; forced
    # 4-row strips (S=4) so the cross-strip halo path is exercised.
    params6 = _make_params(kp1, Cin, Cout, 6)
    out = jax.block_until_ready(
        inverted_residual_pallas(x, params6, stride=1, expand_ratio=6,
                                 rows_per_strip=4))
    ref = _reference_nchw(x, params6, stride=1, expand_ratio=6)
    assert out.shape == (N, Cout, H, W), out.shape
    assert jnp.allclose(out, ref, atol=2e-2, rtol=2e-2), float(jnp.abs(out - ref).max())

    # Case 2: stride=1, expand_ratio=1 -> no expand conv (weights not DMA'd);
    # strip size auto-derived from the per-generation VMEM budget.
    params1 = _make_params(kp2, Cin, Cout, 1)
    out1 = jax.block_until_ready(
        inverted_residual_pallas(x, params1, stride=1, expand_ratio=1))
    ref1 = _reference_nchw(x, params1, stride=1, expand_ratio=1)
    assert out1.shape == (N, Cout, H, W), out1.shape
    assert jnp.allclose(out1, ref1, atol=2e-2, rtol=2e-2), float(jnp.abs(out1 - ref1).max())

    # Case 3: stride=2, expand_ratio=6, Cin != Cout (no residual); 4-row
    # output strips over Ho=8 (S=2) exercise the strided depthwise path.
    Cout2 = 8
    params2 = _make_params(kp3, Cin, Cout2, 6)
    out2 = jax.block_until_ready(
        inverted_residual_pallas(x, params2, stride=2, expand_ratio=6,
                                 rows_per_strip=4))
    ref2 = _reference_nchw(x, params2, stride=2, expand_ratio=6)
    assert out2.shape == (N, Cout2, H // 2, W // 2), out2.shape
    assert jnp.allclose(out2, ref2, atol=2e-2, rtol=2e-2), float(jnp.abs(out2 - ref2).max())

    print("KERNEL_OK")
</pallas_src>

<mosaic_0001>
module attributes {stable_mosaic.version = 11 : i64} {
  func.func @_inverted_residual_kernel(%arg0: i32, %arg1: i32, %arg2: memref<1x1x16x128xbf16, #tpu.memory_space<vmem>>, %arg3: memref<1x4x16x128xbf16, #tpu.memory_space<vmem>>, %arg4: memref<1x1x16x128xbf16, #tpu.memory_space<vmem>>, %arg5: memref<128x128xbf16, #tpu.memory_space<vmem>>, %arg6: memref<1x128xf32, #tpu.memory_space<vmem>>, %arg7: memref<3x3x128xf32, #tpu.memory_space<vmem>>, %arg8: memref<1x128xf32, #tpu.memory_space<vmem>>, %arg9: memref<128x128xbf16, #tpu.memory_space<vmem>>, %arg10: memref<1x128xf32, #tpu.memory_space<vmem>>, %arg11: memref<1x4x16x128xbf16, #tpu.memory_space<vmem>>, %arg12: memref<6x24x128xbf16, #tpu.memory_space<vmem>>) attributes {dimension_semantics = [#tpu.dimension_semantics<parallel>, #tpu.dimension_semantics<parallel>], iteration_bounds = array<i64: 2, 4>, scalar_prefetch = 0 : i64, scratch_operands = 1 : i64, tpu.core_type = #tpu.core_type<tc>, window_params = [{transform_indices = @transform_0, window_bounds = array<i64: 1, 1, 16, 128>}, {transform_indices = @transform_1, window_bounds = array<i64: 1, 4, 16, 128>}, {transform_indices = @transform_2, window_bounds = array<i64: 1, 1, 16, 128>}, {pipeline_mode = #tpu.pipeline_mode<synchronous>, transform_indices = @transform_3, window_bounds = array<i64: 128, 128>}, {pipeline_mode = #tpu.pipeline_mode<synchronous>, transform_indices = @transform_4, window_bounds = array<i64: 1, 128>}, {pipeline_mode = #tpu.pipeline_mode<synchronous>, transform_indices = @transform_5, window_bounds = array<i64: 3, 3, 128>}, {pipeline_mode = #tpu.pipeline_mode<synchronous>, transform_indices = @transform_6, window_bounds = array<i64: 1, 128>}, {pipeline_mode = #tpu.pipeline_mode<synchronous>, transform_indices = @transform_7, window_bounds = array<i64: 128, 128>}, {pipeline_mode = #tpu.pipeline_mode<synchronous>, transform_indices = @transform_8, window_bounds = array<i64: 1, 128>}, {transform_indices = @transform_9, window_bounds = array<i64: 1, 4, 16, 128>}]} {
    %c0 = arith.constant 0 : index
    %c0_0 = arith.constant 0 : index
    %c0_1 = arith.constant 0 : index
    %c0_2 = arith.constant 0 : index
    %0 = vector.load %arg2[%c0, %c0_0, %c0_1, %c0_2] : memref<1x1x16x128xbf16, #tpu.memory_space<vmem>>, vector<1x1x16x128xbf16>
    %1 = vector.shape_cast %0 : vector<1x1x16x128xbf16> to vector<1x16x128xbf16>
    %c0_3 = arith.constant 0 : index
    %c0_4 = arith.constant 0 : index
    %c0_5 = arith.constant 0 : index
    %c0_6 = arith.constant 0 : index
    %2 = vector.load %arg3[%c0_3, %c0_4, %c0_5, %c0_6] : memref<1x4x16x128xbf16, #tpu.memory_space<vmem>>, vector<1x4x16x128xbf16>
    %3 = vector.shape_cast %2 : vector<1x4x16x128xbf16> to vector<4x16x128xbf16>
    %c0_7 = arith.constant 0 : index
    %c0_8 = arith.constant 0 : index
    %c0_9 = arith.constant 0 : index
    %c0_10 = arith.constant 0 : index
    %4 = vector.load %arg4[%c0_7, %c0_8, %c0_9, %c0_10] : memref<1x1x16x128xbf16, #tpu.memory_space<vmem>>, vector<1x1x16x128xbf16>
    %5 = vector.shape_cast %4 : vector<1x1x16x128xbf16> to vector<1x16x128xbf16>
    %6 = tpu.concatenate %1, %3, %5 in 0 : vector<1x16x128xbf16>, vector<4x16x128xbf16>, vector<1x16x128xbf16> -> vector<6x16x128xbf16>
    %7 = vector.shape_cast %6 : vector<6x16x128xbf16> to vector<96x128xbf16>
    %c0_11 = arith.constant 0 : index
    %c0_12 = arith.constant 0 : index
    %8 = vector.load %arg5[%c0_11, %c0_12] : memref<128x128xbf16, #tpu.memory_space<vmem>>, vector<128x128xbf16>
    %cst = arith.constant dense<0.000000e+00> : vector<96x128xf32>
    %9 = tpu.matmul %7, %8, %cst {dimension_numbers = #tpu.dot_dimension_numbers<[1], [0], [0], [1], [0, 0, 1, 1], [], []>} : vector<96x128xbf16>, vector<128x128xbf16>, vector<96x128xf32> -> vector<96x128xf32>
    %c0_13 = arith.constant 0 : index
    %c0_14 = arith.constant 0 : index
    %10 = vector.load %arg6[%c0_13, %c0_14] : memref<1x128xf32, #tpu.memory_space<vmem>>, vector<1x128xf32>
    %11 = vector.broadcast %10 : vector<1x128xf32> to vector<96x128xf32>
    %12 = arith.addf %9, %11 : vector<96x128xf32>
    %cst_15 = arith.constant 0.000000e+00 : f32
    %cst_16 = arith.constant 6.000000e+00 : f32
    %13 = vector.broadcast %cst_15 : f32 to vector<96x128xf32>
    %14 = arith.maximumf %13, %12 : vector<96x128xf32>
    %15 = vector.broadcast %cst_16 : f32 to vector<96x128xf32>
    %16 = arith.minimumf %15, %14 : vector<96x128xf32>
    %17 = vector.shape_cast %16 : vector<96x128xf32> to vector<6x16x128xf32>
    %18 = arith.truncf %17 : vector<6x16x128xf32> to vector<6x16x128xbf16>
    %cst_17 = arith.constant 0.000000e+00 : bf16
    %19 = vector.broadcast %cst_17 : bf16 to vector<6x1x128xbf16>
    %c0_18 = arith.constant 0 : index
    %c0_19 = arith.constant 0 : index
    %c0_20 = arith.constant 0 : index
    %20 = vector.load %arg12[%c0_18, %c0_19, %c0_20] : memref<6x24x128xbf16, #tpu.memory_space<vmem>>, vector<6x1x128xbf16>
    tpu.vector_store %arg12[%c0_18, %c0_19, %c0_20], %19 {strides = array<i32>} : memref<6x24x128xbf16, #tpu.memory_space<vmem>>, vector<6x1x128xbf16>,
    %cst_21 = arith.constant 0.000000e+00 : bf16
    %21 = vector.broadcast %cst_21 : bf16 to vector<6x7x128xbf16>
    %c0_22 = arith.constant 0 : index
    %c17 = arith.constant 17 : index
    %c0_23 = arith.constant 0 : index
    %22 = vector.load %arg12[%c0_22, %c17, %c0_23] : memref<6x24x128xbf16, #tpu.memory_space<vmem>>, vector<6x7x128xbf16>
    tpu.vector_store %arg12[%c0_22, %c17, %c0_23], %21 {strides = array<i32>} : memref<6x24x128xbf16, #tpu.memory_space<vmem>>, vector<6x7x128xbf16>,
    %c0_24 = arith.constant 0 : index
    %c1 = arith.constant 1 : index
    %c0_25 = arith.constant 0 : index
    %23 = vector.load %arg12[%c0_24, %c1, %c0_25] : memref<6x24x128xbf16, #tpu.memory_space<vmem>>, vector<6x16x128xbf16>
    tpu.vector_store %arg12[%c0_24, %c1, %c0_25], %18 {strides = array<i32>} : memref<6x24x128xbf16, #tpu.memory_space<vmem>>, vector<6x16x128xbf16>,
    %c0_i32 = arith.constant 0 : i32
    %24 = arith.cmpi eq, %arg1, %c0_i32 : i32
    %25 = arith.extui %24 : i1 to i32
    %c0_i32_26 = arith.constant 0 : i32
    %26 = arith.cmpi ne, %25, %c0_i32_26 : i32
    scf.if %26 {
      %cst_99 = arith.constant 0.000000e+00 : bf16
      %127 = vector.broadcast %cst_99 : bf16 to vector<1x24x128xbf16>
      %c0_100 = arith.constant 0 : index
      %c0_101 = arith.constant 0 : index
      %c0_102 = arith.constant 0 : index
      %128 = vector.load %arg12[%c0_100, %c0_101, %c0_102] : memref<6x24x128xbf16, #tpu.memory_space<vmem>>, vector<1x24x128xbf16>
      tpu.vector_store %arg12[%c0_100, %c0_101, %c0_102], %127 {strides = array<i32>} : memref<6x24x128xbf16, #tpu.memory_space<vmem>>, vector<1x24x128xbf16>,
    } else {
    }
    %c3_i32 = arith.constant 3 : i32
    %27 = arith.cmpi eq, %arg1, %c3_i32 : i32
    %28 = arith.extui %27 : i1 to i32
    %c0_i32_27 = arith.constant 0 : i32
    %29 = arith.cmpi ne, %28, %c0_i32_27 : i32
    scf.if %29 {
      %cst_99 = arith.constant 0.000000e+00 : bf16
      %127 = vector.broadcast %cst_99 : bf16 to vector<1x24x128xbf16>
      %c5 = arith.constant 5 : index
      %c0_100 = arith.constant 0 : index
      %c0_101 = arith.constant 0 : index
      %128 = vector.load %arg12[%c5, %c0_100, %c0_101] : memref<6x24x128xbf16, #tpu.memory_space<vmem>>, vector<1x24x128xbf16>
      tpu.vector_store %arg12[%c5, %c0_100, %c0_101], %127 {strides = array<i32>} : memref<6x24x128xbf16, #tpu.memory_space<vmem>>, vector<1x24x128xbf16>,
    } else {
    }
    %cst_28 = arith.constant 0.000000e+00 : f32
    %30 = vector.broadcast %cst_28 : f32 to vector<4x16x128xf32>
    %c0_29 = arith.constant 0 : index
    %c0_30 = arith.constant 0 : index
    %c0_31 = arith.constant 0 : index
    %31 = vector.load %arg7[%c0_29, %c0_30, %c0_31] : memref<3x3x128xf32, #tpu.memory_space<vmem>>, vector<1x1x128xf32>
    %32 = vector.shape_cast %31 : vector<1x1x128xf32> to vector<128xf32>
    %33 = vector.shape_cast %32 : vector<128xf32> to vector<1x1x128xf32>
    %c0_32 = arith.constant 0 : index
    %c0_33 = arith.constant 0 : index
    %c0_34 = arith.constant 0 : index
    %34 = vector.load %arg12[%c0_32, %c0_33, %c0_34] : memref<6x24x128xbf16, #tpu.memory_space<vmem>>, vector<4x16x128xbf16>
    %35 = arith.extf %34 : vector<4x16x128xbf16> to vector<4x16x128xf32>
    %36 = vector.broadcast %33 : vector<1x1x128xf32> to vector<4x16x128xf32>
    %37 = arith.mulf %35, %36 : vector<4x16x128xf32>
    %38 = arith.addf %30, %37 : vector<4x16x128xf32>
    %c0_35 = arith.constant 0 : index
    %c1_36 = arith.constant 1 : index
    %c0_37 = arith.constant 0 : index
    %39 = vector.load %arg7[%c0_35, %c1_36, %c0_37] : memref<3x3x128xf32, #tpu.memory_space<vmem>>, vector<1x1x128xf32>
    %40 = vector.shape_cast %39 : vector<1x1x128xf32> to vector<128xf32>
    %41 = vector.shape_cast %40 : vector<128xf32> to vector<1x1x128xf32>
    %c0_38 = arith.constant 0 : index
    %c1_39 = arith.constant 1 : index
    %c0_40 = arith.constant 0 : index
    %42 = vector.load %arg12[%c0_38, %c1_39, %c0_40] : memref<6x24x128xbf16, #tpu.memory_space<vmem>>, vector<4x16x128xbf16>
    %43 = arith.extf %42 : vector<4x16x128xbf16> to vector<4x16x128xf32>
    %44 = vector.broadcast %41 : vector<1x1x128xf32> to vector<4x16x128xf32>
    %45 = arith.mulf %43, %44 : vector<4x16x128xf32>
    %46 = arith.addf %38, %45 : vector<4x16x128xf32>
    %c0_41 = arith.constant 0 : index
    %c2 = arith.constant 2 : index
    %c0_42 = arith.constant 0 : index
    %47 = vector.load %arg7[%c0_41, %c2, %c0_42] : memref<3x3x128xf32, #tpu.memory_space<vmem>>, vector<1x1x128xf32>
    %48 = vector.shape_cast %47 : vector<1x1x128xf32> to vector<128xf32>
    %49 = vector.shape_cast %48 : vector<128xf32> to vector<1x1x128xf32>
    %c0_43 = arith.constant 0 : index
    %c2_44 = arith.constant 2 : index
    %c0_45 = arith.constant 0 : index
    %50 = vector.load %arg12[%c0_43, %c2_44, %c0_45] : memref<6x24x128xbf16, #tpu.memory_space<vmem>>, vector<4x16x128xbf16>
    %51 = arith.extf %50 : vector<4x16x128xbf16> to vector<4x16x128xf32>
    %52 = vector.broadcast %49 : vector<1x1x128xf32> to vector<4x16x128xf32>
    %53 = arith.mulf %51, %52 : vector<4x16x128xf32>
    %54 = arith.addf %46, %53 : vector<4x16x128xf32>
    %c1_46 = arith.constant 1 : index
    %c0_47 = arith.constant 0 : index
    %c0_48 = arith.constant 0 : index
    %55 = vector.load %arg7[%c1_46, %c0_47, %c0_48] : memref<3x3x128xf32, #tpu.memory_space<vmem>>, vector<1x1x128xf32>
    %56 = vector.shape_cast %55 : vector<1x1x128xf32> to vector<128xf32>
    %57 = vector.shape_cast %56 : vector<128xf32> to vector<1x1x128xf32>
    %c1_49 = arith.constant 1 : index
    %c0_50 = arith.constant 0 : index
    %c0_51 = arith.constant 0 : index
    %58 = vector.load %arg12[%c1_49, %c0_50, %c0_51] : memref<6x24x128xbf16, #tpu.memory_space<vmem>>, vector<4x16x128xbf16>
    %59 = arith.extf %58 : vector<4x16x128xbf16> to vector<4x16x128xf32>
    %60 = vector.broadcast %57 : vector<1x1x128xf32> to vector<4x16x128xf32>
    %61 = arith.mulf %59, %60 : vector<4x16x128xf32>
    %62 = arith.addf %54, %61 : vector<4x16x128xf32>
    %c1_52 = arith.constant 1 : index
    %c1_53 = arith.constant 1 : index
    %c0_54 = arith.constant 0 : index
    %63 = vector.load %arg7[%c1_52, %c1_53, %c0_54] : memref<3x3x128xf32, #tpu.memory_space<vmem>>, vector<1x1x128xf32>
    %64 = vector.shape_cast %63 : vector<1x1x128xf32> to vector<128xf32>
    %65 = vector.shape_cast %64 : vector<128xf32> to vector<1x1x128xf32>
    %c1_55 = arith.constant 1 : index
    %c1_56 = arith.constant 1 : index
    %c0_57 = arith.constant 0 : index
    %66 = vector.load %arg12[%c1_55, %c1_56, %c0_57] : memref<6x24x128xbf16, #tpu.memory_space<vmem>>, vector<4x16x128xbf16>
    %67 = arith.extf %66 : vector<4x16x128xbf16> to vector<4x16x128xf32>
    %68 = vector.broadcast %65 : vector<1x1x128xf32> to vector<4x16x128xf32>
    %69 = arith.mulf %67, %68 : vector<4x16x128xf32>
    %70 = arith.addf %62, %69 : vector<4x16x128xf32>
    %c1_58 = arith.constant 1 : index
    %c2_59 = arith.constant 2 : index
    %c0_60 = arith.constant 0 : index
    %71 = vector.load %arg7[%c1_58, %c2_59, %c0_60] : memref<3x3x128xf32, #tpu.memory_space<vmem>>, vector<1x1x128xf32>
    %72 = vector.shape_cast %71 : vector<1x1x128xf32> to vector<128xf32>
    %73 = vector.shape_cast %72 : vector<128xf32> to vector<1x1x128xf32>
    %c1_61 = arith.constant 1 : index
    %c2_62 = arith.constant 2 : index
    %c0_63 = arith.constant 0 : index
    %74 = vector.load %arg12[%c1_61, %c2_62, %c0_63] : memref<6x24x128xbf16, #tpu.memory_space<vmem>>, vector<4x16x128xbf16>
    %75 = arith.extf %74 : vector<4x16x128xbf16> to vector<4x16x128xf32>
    %76 = vector.broadcast %73 : vector<1x1x128xf32> to vector<4x16x128xf32>
    %77 = arith.mulf %75, %76 : vector<4x16x128xf32>
    %78 = arith.addf %70, %77 : vector<4x16x128xf32>
    %c2_64 = arith.constant 2 : index
    %c0_65 = arith.constant 0 : index
    %c0_66 = arith.constant 0 : index
    %79 = vector.load %arg7[%c2_64, %c0_65, %c0_66] : memref<3x3x128xf32, #tpu.memory_space<vmem>>, vector<1x1x128xf32>
    %80 = vector.shape_cast %79 : vector<1x1x128xf32> to vector<128xf32>
    %81 = vector.shape_cast %80 : vector<128xf32> to vector<1x1x128xf32>
    %c2_67 = arith.constant 2 : index
    %c0_68 = arith.constant 0 : index
    %c0_69 = arith.constant 0 : index
    %82 = vector.load %arg12[%c2_67, %c0_68, %c0_69] : memref<6x24x128xbf16, #tpu.memory_space<vmem>>, vector<4x16x128xbf16>
    %83 = arith.extf %82 : vector<4x16x128xbf16> to vector<4x16x128xf32>
    %84 = vector.broadcast %81 : vector<1x1x128xf32> to vector<4x16x128xf32>
    %85 = arith.mulf %83, %84 : vector<4x16x128xf32>
    %86 = arith.addf %78, %85 : vector<4x16x128xf32>
    %c2_70 = arith.constant 2 : index
    %c1_71 = arith.constant 1 : index
    %c0_72 = arith.constant 0 : index
    %87 = vector.load %arg7[%c2_70, %c1_71, %c0_72] : memref<3x3x128xf32, #tpu.memory_space<vmem>>, vector<1x1x128xf32>
    %88 = vector.shape_cast %87 : vector<1x1x128xf32> to vector<128xf32>
    %89 = vector.shape_cast %88 : vector<128xf32> to vector<1x1x128xf32>
    %c2_73 = arith.constant 2 : index
    %c1_74 = arith.constant 1 : index
    %c0_75 = arith.constant 0 : index
    %90 = vector.load %arg12[%c2_73, %c1_74, %c0_75] : memref<6x24x128xbf16, #tpu.memory_space<vmem>>, vector<4x16x128xbf16>
    %91 = arith.extf %90 : vector<4x16x128xbf16> to vector<4x16x128xf32>
    %92 = vector.broadcast %89 : vector<1x1x128xf32> to vector<4x16x128xf32>
    %93 = arith.mulf %91, %92 : vector<4x16x128xf32>
    %94 = arith.addf %86, %93 : vector<4x16x128xf32>
    %c2_76 = arith.constant 2 : index
    %c2_77 = arith.constant 2 : index
    %c0_78 = arith.constant 0 : index
    %95 = vector.load %arg7[%c2_76, %c2_77, %c0_78] : memref<3x3x128xf32, #tpu.memory_space<vmem>>, vector<1x1x128xf32>
    %96 = vector.shape_cast %95 : vector<1x1x128xf32> to vector<128xf32>
    %97 = vector.shape_cast %96 : vector<128xf32> to vector<1x1x128xf32>
    %c2_79 = arith.constant 2 : index
    %c2_80 = arith.constant 2 : index
    %c0_81 = arith.constant 0 : index
    %98 = vector.load %arg12[%c2_79, %c2_80, %c0_81] : memref<6x24x128xbf16, #tpu.memory_space<vmem>>, vector<4x16x128xbf16>
    %99 = arith.extf %98 : vector<4x16x128xbf16> to vector<4x16x128xf32>
    %100 = vector.broadcast %97 : vector<1x1x128xf32> to vector<4x16x128xf32>
    %101 = arith.mulf %99, %100 : vector<4x16x128xf32>
    %102 = arith.addf %94, %101 : vector<4x16x128xf32>
    %103 = vector.shape_cast %102 : vector<4x16x128xf32> to vector<64x128xf32>
    %c0_82 = arith.constant 0 : index
    %c0_83 = arith.constant 0 : index
    %104 = vector.load %arg8[%c0_82, %c0_83] : memref<1x128xf32, #tpu.memory_space<vmem>>, vector<1x128xf32>
    %105 = vector.broadcast %104 : vector<1x128xf32> to vector<64x128xf32>
    %106 = arith.addf %103, %105 : vector<64x128xf32>
    %cst_84 = arith.constant 0.000000e+00 : f32
    %cst_85 = arith.constant 6.000000e+00 : f32
    %107 = vector.broadcast %cst_84 : f32 to vector<64x128xf32>
    %108 = arith.maximumf %107, %106 : vector<64x128xf32>
    %109 = vector.broadcast %cst_85 : f32 to vector<64x128xf32>
    %110 = arith.minimumf %109, %108 : vector<64x128xf32>
    %111 = arith.truncf %110 : vector<64x128xf32> to vector<64x128xbf16>
    %c0_86 = arith.constant 0 : index
    %c0_87 = arith.constant 0 : index
    %112 = vector.load %arg9[%c0_86, %c0_87] : memref<128x128xbf16, #tpu.memory_space<vmem>>, vector<128x128xbf16>
    %cst_88 = arith.constant dense<0.000000e+00> : vector<64x128xf32>
    %113 = tpu.matmul %111, %112, %cst_88 {dimension_numbers = #tpu.dot_dimension_numbers<[1], [0], [0], [1], [0, 0, 1, 1], [], []>} : vector<64x128xbf16>, vector<128x128xbf16>, vector<64x128xf32> -> vector<64x128xf32>
    %c0_89 = arith.constant 0 : index
    %c0_90 = arith.constant 0 : index
    %114 = vector.load %arg10[%c0_89, %c0_90] : memref<1x128xf32, #tpu.memory_space<vmem>>, vector<1x128xf32>
    %115 = vector.broadcast %114 : vector<1x128xf32> to vector<64x128xf32>
    %116 = arith.addf %113, %115 : vector<64x128xf32>
    %c0_91 = arith.constant 0 : index
    %c0_92 = arith.constant 0 : index
    %c0_93 = arith.constant 0 : index
    %c0_94 = arith.constant 0 : index
    %117 = vector.load %arg3[%c0_91, %c0_92, %c0_93, %c0_94] : memref<1x4x16x128xbf16, #tpu.memory_space<vmem>>, vector<1x4x16x128xbf16>
    %118 = vector.shape_cast %117 : vector<1x4x16x128xbf16> to vector<4x16x128xbf16>
    %119 = vector.shape_cast %118 : vector<4x16x128xbf16> to vector<64x128xbf16>
    %120 = arith.extf %119 : vector<64x128xbf16> to vector<64x128xf32>
    %121 = arith.addf %116, %120 : vector<64x128xf32>
    %122 = vector.shape_cast %121 : vector<64x128xf32> to vector<4x16x128xf32>
    %123 = arith.truncf %122 : vector<4x16x128xf32> to vector<4x16x128xbf16>
    %c0_95 = arith.constant 0 : index
    %c0_96 = arith.constant 0 : index
    %c0_97 = arith.constant 0 : index
    %c0_98 = arith.constant 0 : index
    %124 = vector.load %arg11[%c0_95, %c0_96, %c0_97, %c0_98] : memref<1x4x16x128xbf16, #tpu.memory_space<vmem>>, vector<1x4x16x128xbf16>
    %125 = vector.shape_cast %124 : vector<1x4x16x128xbf16> to vector<4x16x128xbf16>
    %126 = vector.shape_cast %123 : vector<4x16x128xbf16> to vector<1x4x16x128xbf16>
    tpu.vector_store %arg11[%c0_95, %c0_96, %c0_97, %c0_98], %126 {strides = array<i32>} : memref<1x4x16x128xbf16, #tpu.memory_space<vmem>>, vector<1x4x16x128xbf16>,
    return
  }
  func.func @transform_0(%arg0: i32, %arg1: i32) -> (i32, i32, i32, i32) {
    %c4_i32 = arith.constant 4 : i32
    %0 = arith.muli %arg1, %c4_i32 : i32
    %c1_i32 = arith.constant 1 : i32
    %1 = arith.subi %0, %c1_i32 : i32
    %c0_i32 = arith.constant 0 : i32
    %2 = arith.maxsi %1, %c0_i32 : i32
    %c0_i32_0 = arith.constant 0 : i32
    %c0_i32_1 = arith.constant 0 : i32
    %c0_i32_2 = arith.constant 0 : i32
    return %arg0, %2, %c0_i32_0, %c0_i32_1 : i32, i32, i32, i32
  }
  func.func @transform_1(%arg0: i32, %arg1: i32) -> (i32, i32, i32, i32) {
    %c0_i32 = arith.constant 0 : i32
    %c0_i32_0 = arith.constant 0 : i32
    %c0_i32_1 = arith.constant 0 : i32
    return %arg0, %arg1, %c0_i32, %c0_i32_0 : i32, i32, i32, i32
  }
  func.func @transform_2(%arg0: i32, %arg1: i32) -> (i32, i32, i32, i32) {
    %c1_i32 = arith.constant 1 : i32
    %0 = arith.addi %arg1, %c1_i32 : i32
    %c4_i32 = arith.constant 4 : i32
    %1 = arith.muli %0, %c4_i32 : i32
    %c15_i32 = arith.constant 15 : i32
    %2 = arith.minsi %1, %c15_i32 : i32
    %c0_i32 = arith.constant 0 : i32
    %c0_i32_0 = arith.constant 0 : i32
    %c0_i32_1 = arith.constant 0 : i32
    return %arg0, %2, %c0_i32, %c0_i32_0 : i32, i32, i32, i32
  }
  func.func @transform_3(%arg0: i32, %arg1: i32) -> (i32, i32) {
    %c0_i32 = arith.constant 0 : i32
    %c0_i32_0 = arith.constant 0 : i32
    %c0_i32_1 = arith.constant 0 : i32
    return %c0_i32, %c0_i32_0 : i32, i32
  }
  func.func @transform_4(%arg0: i32, %arg1: i32) -> (i32, i32) {
    %c0_i32 = arith.constant 0 : i32
    %c0_i32_0 = arith.constant 0 : i32
    %c0_i32_1 = arith.constant 0 : i32
    return %c0_i32, %c0_i32_0 : i32, i32
  }
  func.func @transform_5(%arg0: i32, %arg1: i32) -> (i32, i32, i32) {
    %c0_i32 = arith.constant 0 : i32
    %c0_i32_0 = arith.constant 0 : i32
    %c0_i32_1 = arith.constant 0 : i32
    %c0_i32_2 = arith.constant 0 : i32
    return %c0_i32, %c0_i32_0, %c0_i32_1 : i32, i32, i32
  }
  func.func @transform_6(%arg0: i32, %arg1: i32) -> (i32, i32) {
    %c0_i32 = arith.constant 0 : i32
    %c0_i32_0 = arith.constant 0 : i32
    %c0_i32_1 = arith.constant 0 : i32
    return %c0_i32, %c0_i32_0 : i32, i32
  }
  func.func @transform_7(%arg0: i32, %arg1: i32) -> (i32, i32) {
    %c0_i32 = arith.constant 0 : i32
    %c0_i32_0 = arith.constant 0 : i32
    %c0_i32_1 = arith.constant 0 : i32
    return %c0_i32, %c0_i32_0 : i32, i32
  }
  func.func @transform_8(%arg0: i32, %arg1: i32) -> (i32, i32) {
    %c0_i32 = arith.constant 0 : i32
    %c0_i32_0 = arith.constant 0 : i32
    %c0_i32_1 = arith.constant 0 : i32
    return %c0_i32, %c0_i32_0 : i32, i32
  }
  func.func @transform_9(%arg0: i32, %arg1: i32) -> (i32, i32, i32, i32) {
    %c0_i32 = arith.constant 0 : i32
    %c0_i32_0 = arith.constant 0 : i32
    %c0_i32_1 = arith.constant 0 : i32
    return %arg0, %arg1, %c0_i32, %c0_i32_0 : i32, i32, i32, i32
  }
}

</mosaic_0001>

<llo_original>
// kernel: tpu_custom_call.1
$region0: #{tpu_custom_call.1}
  #allocation0 [shape = 'u32[]', space=smem, size = 0x4, offset = 0x4, fixed_abs, tag = 'smem constant byte address 0x4 - core index']
  #allocation1 [shape = 'u32[72,128]{1,0:T(1,128)}', space=vmem, size = 0x9000, scoped, tag = 'internal scratch']
  #allocation2 [shape = 'bf16[6,24,128]{2,1,0:T(8,128)(2,1)}', space=vmem, size = 0x9000, scoped, tag = 'scratch operand']
  %s0 = inlined_call_operand.hbm [shape: bf16[2,16,16,128], index: 0, kind: input, shape index: {}]
  %s1 = inlined_call_operand.hbm [shape: bf16[2,16,16,128], index: 1, kind: input, shape index: {}]
  %s2 = inlined_call_operand.hbm [shape: bf16[2,16,16,128], index: 2, kind: input, shape index: {}]
  %s3 = inlined_call_operand.hbm [shape: bf16[128,128], index: 3, kind: input, shape index: {}]
  %s4 = inlined_call_operand.vmem [shape: f32[1,128], index: 4, kind: input, shape index: {}]
  %s5 = inlined_call_operand.hbm [shape: f32[3,3,128], index: 5, kind: input, shape index: {}]
  %s6 = inlined_call_operand.vmem [shape: f32[1,128], index: 6, kind: input, shape index: {}]
  %s7 = inlined_call_operand.hbm [shape: bf16[128,128], index: 7, kind: input, shape index: {}]
  %s8 = inlined_call_operand.vmem [shape: f32[1,128], index: 8, kind: input, shape index: {}]
  %s9 = inlined_call_operand.hbm [shape: bf16[2,16,16,128], index: 9, kind: output, shape index: {}]
  %s10 = sld [smem:[#allocation0]]
  $region101: #{tpu_custom_call.1} parent=0
    _
  %s12 = ssub.s32 1, %s10
  %s13 = scalar_select 0, %s12, %s10
  $region1: #{tpu_custom_call.1} parent=0
    #allocation3 [shape = 'u8[8192]{0}', space=vmem, size = 0x2000, scoped, tag = 'input window, operand 0']
    #allocation4 [shape = 's32[2]{0}', space=sflag, size = 0x8, scoped, tag = 'scoped memory for tpu_custom_call.1']
    #allocation5 [shape = 's32[2]{0}', space=sflag, size = 0x8, scoped, tag = 'scoped memory for tpu_custom_call.1']
    #allocation6 [shape = 'u8[32768]{0}', space=vmem, size = 0x8000, scoped, tag = 'input window, operand 1']
    #allocation7 [shape = 's32[2]{0}', space=sflag, size = 0x8, scoped, tag = 'scoped memory for tpu_custom_call.1']
    #allocation8 [shape = 'u8[8192]{0}', space=vmem, size = 0x2000, scoped, tag = 'input window, operand 2']
    #allocation9 [shape = 'u8[32768]{0}', space=vmem, size = 0x8000, scoped, tag = 'input window, operand 3, single buffered']
    #allocation10 [shape = 's32[1]{0}', space=sflag, size = 0x4, scoped, tag = 'scoped memory for tpu_custom_call.1']
    #allocation11 [shape = 'u8[6144]{0}', space=vmem, size = 0x1800, scoped, tag = 'input window, operand 5, single buffered']
    #allocation12 [shape = 'u8[32768]{0}', space=vmem, size = 0x8000, scoped, tag = 'input window, operand 7, single buffered']
    #allocation13 [shape = 's32[1]{0}', space=sflag, size = 0x4, scoped, tag = 'scoped memory for tpu_custom_call.1']
    #allocation14 [shape = 'u8[32768]{0}', space=vmem, size = 0x8000, scoped, tag = 'output window, operand 0']
    %14 = vsyncpa [#allocation4], 0
    %s15 = scalar_lea.sflag [#allocation4], 1
    %16 = vsyncpa %s15, 0
    %17 = vsyncpa [#allocation7], 0
    %s18 = scalar_lea.sflag [#allocation7], 1
    %19 = vsyncpa %s18, 0
    %20 = vsyncpa [#allocation10], 0
    %21 = vsyncpa [#allocation13], 0
    %22 = vsyncpa [#allocation5], 0
    %s23 = scalar_lea.sflag [#allocation5], 1
    %24 = vsyncpa %s23, 0
    loop: start=0, step=1, limit=10
    $region2: #{tpu_custom_call.1} parent=1 // loop_pre_header
      _
    $region3: #{tpu_custom_call.1} parent=1 // loop_header
      %s26 = sphi 0, %s30
      %p27 = scmp.ge.s32.totalorder %s26, 10
      %s33 = sphi 0, %s45
      %s34 = sphi 0, %s41
      %s35 = sphi 0, %s33
      %s36 = sphi 0, %s34
      %s37 = sphi 0, %s35
      %s38 = sphi 0, %s36
      %s58 = sphi 0, %s60
      %s61 = sphi 0, %s58
      %s62 = sphi 0, %s61
      %s78 = sphi 0, %s62
      %s86 = sphi 0, %s88
      %s89 = sphi 0, %s86
      %s90 = sphi 0, %s89
      %s106 = sphi 0, %s90
      %s122 = sphi 0, %s124
      %s125 = sphi 0, %s122
      %s126 = sphi 0, %s125
      %s142 = sphi 0, %s126
      %s146 = sphi 0, %s146
      %s148 = sphi 0, %s146
      %s149 = sphi 0, %s148
      %s163 = sphi 0, %s149
      %s167 = sphi 0, %s167
      %s169 = sphi 0, %s167
      %s170 = sphi 0, %s169
      %s184 = sphi 0, %s170
      %s188 = sphi 0, %s188
      %s190 = sphi 0, %s188
      %s191 = sphi 0, %s190
      %s205 = sphi 0, %s191
      %s209 = sphi 0, %s209
      %s211 = sphi 0, %s209
      %s212 = sphi 0, %s211
      %s226 = sphi 0, %s212
      %s230 = sphi 0, %s230
      %s232 = sphi 0, %s230
      %s233 = sphi 0, %s232
      %s247 = sphi 0, %s233
      %s251 = sphi 0, %s251
      %s253 = sphi 0, %s251
      %s254 = sphi 0, %s253
      %s268 = sphi 0, %s254
      %s276 = sphi 0, %s278
      %s279 = sphi 0, %s276
      %s280 = sphi 0, %s279
      %s296 = sphi 0, %s280
    $region4: #{tpu_custom_call.1} parent=1 // loop_header_branch
      %29 = sbr.rel (%p27) target = $region8
    $region5: #{tpu_custom_call.1} parent=1 // loop_body
      %s31 = ssub.s32 %s26, 1
      %s32 = ssub.s32 %s26, 2
      %s39 = sadd.s32 1, %s34
      %p40 = scmp.ge.s32.totalorder %s39, 4
      %s41 = scalar_select %p40, 0, %s39
      %s42 = sadd.s32 1, %s33
      %s43 = scalar_select %p40, %s42, %s33
      %p44 = scmp.ge.s32.totalorder %s43, 2
      %s45 = scalar_select %p44, 0, %s43
      %s46 = smul.u32 %s34, 4
      %s47 = ssub.s32 %s46, 1
      %p48 = scmp.gt.s32.totalorder %s47, 0
      %s49 = scalar_select %p48, %s47, 0
      %s50 = smul.u32 %s41, 4
      %s51 = ssub.s32 %s50, 1
      %p52 = scmp.gt.s32.totalorder %s51, 0
      %s53 = scalar_select %p52, %s51, 0
      %s54 = ssub.s32 %s33, %s45
      %s55 = ssub.s32 %s49, %s53
      %s56 = sor.u32 %s54, %s55
      %p57 = scmp.eq.s32.totalorder %s56, 0
      %s59 = sadd.s32 %s58, 1
      %s60 = scalar_select %p57, %s58, %s59
      %p63 = pneg %p57
      %p64 = scmp.eq.s32.totalorder %s26, 7
      %p65 = por %p63, %p64
      %p66 = scmp.ne.s32.totalorder %s58, %s61
      %p67 = scmp.eq.s32.totalorder %s26, 0
      %p68 = por %p66, %p67
      %p69 = scmp.ne.s32.totalorder %s58, %s61
      %p70 = scmp.eq.s32.totalorder %s31, 7
      %p71 = por %p69, %p70
      %p72 = scmp.ne.s32.totalorder %s61, %s62
      %p73 = scmp.eq.s32.totalorder %s31, 0
      %p74 = por %p72, %p73
      %p75 = scmp.ne.s32.totalorder %s61, %s62
      %p76 = scmp.eq.s32.totalorder %s32, 7
      %p77 = por %p75, %p76
      %p79 = scmp.ne.s32.totalorder %s62, %s78
      %p80 = scmp.eq.s32.totalorder %s32, 0
      %p81 = por %p79, %p80
      %s82 = ssub.s32 %s33, %s45
      %s83 = ssub.s32 %s34, %s41
      %s84 = sor.u32 %s82, %s83
      %p85 = scmp.eq.s32.totalorder %s84, 0
      %s87 = sadd.s32 %s86, 1
      %s88 = scalar_select %p85, %s86, %s87
      %p91 = pneg %p85
      %p92 = scmp.eq.s32.totalorder %s26, 7
      %p93 = por %p91, %p92
      %p94 = scmp.ne.s32.totalorder %s86, %s89
      %p95 = scmp.eq.s32.totalorder %s26, 0
      %p96 = por %p94, %p95
      %p97 = scmp.ne.s32.totalorder %s86, %s89
      %p98 = scmp.eq.s32.totalorder %s31, 7
      %p99 = por %p97, %p98
      %p100 = scmp.ne.s32.totalorder %s89, %s90
      %p101 = scmp.eq.s32.totalorder %s31, 0
      %p102 = por %p100, %p101
      %p103 = scmp.ne.s32.totalorder %s89, %s90
      %p104 = scmp.eq.s32.totalorder %s32, 7
      %p105 = por %p103, %p104
      %p107 = scmp.ne.s32.totalorder %s90, %s106
      %p108 = scmp.eq.s32.totalorder %s32, 0
      %p109 = por %p107, %p108
      %s110 = sadd.s32 %s34, 1
      %s111 = smul.u32 %s110, 4
      %p112 = scmp.lt.s32.totalorder %s111, 15
      %s113 = scalar_select %p112, %s111, 15
      %s114 = sadd.s32 %s41, 1
      %s115 = smul.u32 %s114, 4
      %p116 = scmp.lt.s32.totalorder %s115, 15
      %s117 = scalar_select %p116, %s115, 15
      %s118 = ssub.s32 %s33, %s45
      %s119 = ssub.s32 %s113, %s117
      %s120 = sor.u32 %s118, %s119
      %p121 = scmp.eq.s32.totalorder %s120, 0
      %s123 = sadd.s32 %s122, 1
      %s124 = scalar_select %p121, %s122, %s123
      %p127 = pneg %p121
      %p128 = scmp.eq.s32.totalorder %s26, 7
      %p129 = por %p127, %p128
      %p130 = scmp.ne.s32.totalorder %s122, %s125
      %p131 = scmp.eq.s32.totalorder %s26, 0
      %p132 = por %p130, %p131
      %p133 = scmp.ne.s32.totalorder %s122, %s125
      %p134 = scmp.eq.s32.totalorder %s31, 7
      %p135 = por %p133, %p134
      %p136 = scmp.ne.s32.totalorder %s125, %s126
      %p137 = scmp.eq.s32.totalorder %s31, 0
      %p138 = por %p136, %p137
      %p139 = scmp.ne.s32.totalorder %s125, %s126
      %p140 = scmp.eq.s32.totalorder %s32, 7
      %p141 = por %p139, %p140
      %p143 = scmp.ne.s32.totalorder %s126, %s142
      %p144 = scmp.eq.s32.totalorder %s32, 0
      %p145 = por %p143, %p144
      %s147 = sadd.s32 %s146, 1
      %p150 = scmp.eq.s32.totalorder %s26, 7
      %p151 = scmp.ne.s32.totalorder %s146, %s148
      %p152 = scmp.eq.s32.totalorder %s26, 0
      %p153 = por %p151, %p152
      %p154 = scmp.ne.s32.totalorder %s146, %s148
      %p155 = scmp.eq.s32.totalorder %s31, 7
      %p156 = por %p154, %p155
      %p157 = scmp.ne.s32.totalorder %s148, %s149
      %p158 = scmp.eq.s32.totalorder %s31, 0
      %p159 = por %p157, %p158
      %p160 = scmp.ne.s32.totalorder %s148, %s149
      %p161 = scmp.eq.s32.totalorder %s32, 7
      %p162 = por %p160, %p161
      %p164 = scmp.ne.s32.totalorder %s149, %s163
      %p165 = scmp.eq.s32.totalorder %s32, 0
      %p166 = por %p164, %p165
      %s168 = sadd.s32 %s167, 1
      %p171 = scmp.eq.s32.totalorder %s26, 7
      %p172 = scmp.ne.s32.totalorder %s167, %s169
      %p173 = scmp.eq.s32.totalorder %s26, 0
      %p174 = por %p172, %p173
      %p175 = scmp.ne.s32.totalorder %s167, %s169
      %p176 = scmp.eq.s32.totalorder %s31, 7
      %p177 = por %p175, %p176
      %p178 = scmp.ne.s32.totalorder %s169, %s170
      %p179 = scmp.eq.s32.totalorder %s31, 0
      %p180 = por %p178, %p179
      %p181 = scmp.ne.s32.totalorder %s169, %s170
      %p182 = scmp.eq.s32.totalorder %s32, 7
      %p183 = por %p181, %p182
      %p185 = scmp.ne.s32.totalorder %s170, %s184
      %p186 = scmp.eq.s32.totalorder %s32, 0
      %p187 = por %p185, %p186
      %s189 = sadd.s32 %s188, 1
      %p192 = scmp.eq.s32.totalorder %s26, 7
      %p193 = scmp.ne.s32.totalorder %s188, %s190
      %p194 = scmp.eq.s32.totalorder %s26, 0
      %p195 = por %p193, %p194
      %p196 = scmp.ne.s32.totalorder %s188, %s190
      %p197 = scmp.eq.s32.totalorder %s31, 7
      %p198 = por %p196, %p197
      %p199 = scmp.ne.s32.totalorder %s190, %s191
      %p200 = scmp.eq.s32.totalorder %s31, 0
      %p201 = por %p199, %p200
      %p202 = scmp.ne.s32.totalorder %s190, %s191
      %p203 = scmp.eq.s32.totalorder %s32, 7
      %p204 = por %p202, %p203
      %p206 = scmp.ne.s32.totalorder %s191, %s205
      %p207 = scmp.eq.s32.totalorder %s32, 0
      %p208 = por %p206, %p207
      %s210 = sadd.s32 %s209, 1
      %p213 = scmp.eq.s32.totalorder %s26, 7
      %p214 = scmp.ne.s32.totalorder %s209, %s211
      %p215 = scmp.eq.s32.totalorder %s26, 0
      %p216 = por %p214, %p215
      %p217 = scmp.ne.s32.totalorder %s209, %s211
      %p218 = scmp.eq.s32.totalorder %s31, 7
      %p219 = por %p217, %p218
      %p220 = scmp.ne.s32.totalorder %s211, %s212
      %p221 = scmp.eq.s32.totalorder %s31, 0
      %p222 = por %p220, %p221
      %p223 = scmp.ne.s32.totalorder %s211, %s212
      %p224 = scmp.eq.s32.totalorder %s32, 7
      %p225 = por %p223, %p224
      %p227 = scmp.ne.s32.totalorder %s212, %s226
      %p228 = scmp.eq.s32.totalorder %s32, 0
      %p229 = por %p227, %p228
      %s231 = sadd.s32 %s230, 1
      %p234 = scmp.eq.s32.totalorder %s26, 7
      %p235 = scmp.ne.s32.totalorder %s230, %s232
      %p236 = scmp.eq.s32.totalorder %s26, 0
      %p237 = por %p235, %p236
      %p238 = scmp.ne.s32.totalorder %s230, %s232
      %p239 = scmp.eq.s32.totalorder %s31, 7
      %p240 = por %p238, %p239
      %p241 = scmp.ne.s32.totalorder %s232, %s233
      %p242 = scmp.eq.s32.totalorder %s31, 0
      %p243 = por %p241, %p242
      %p244 = scmp.ne.s32.totalorder %s232, %s233
      %p245 = scmp.eq.s32.totalorder %s32, 7
      %p246 = por %p244, %p245
      %p248 = scmp.ne.s32.totalorder %s233, %s247
      %p249 = scmp.eq.s32.totalorder %s32, 0
      %p250 = por %p248, %p249
      %s252 = sadd.s32 %s251, 1
      %p255 = scmp.eq.s32.totalorder %s26, 7
      %p256 = scmp.ne.s32.totalorder %s251, %s253
      %p257 = scmp.eq.s32.totalorder %s26, 0
      %p258 = por %p256, %p257
      %p259 = scmp.ne.s32.totalorder %s251, %s253
      %p260 = scmp.eq.s32.totalorder %s31, 7
      %p261 = por %p259, %p260
      %p262 = scmp.ne.s32.totalorder %s253, %s254
      %p263 = scmp.eq.s32.totalorder %s31, 0
      %p264 = por %p262, %p263
      %p265 = scmp.ne.s32.totalorder %s253, %s254
      %p266 = scmp.eq.s32.totalorder %s32, 7
      %p267 = por %p265, %p266
      %p269 = scmp.ne.s32.totalorder %s254, %s268
      %p270 = scmp.eq.s32.totalorder %s32, 0
      %p271 = por %p269, %p270
      %s272 = ssub.s32 %s33, %s45
      %s273 = ssub.s32 %s34, %s41
      %s274 = sor.u32 %s272, %s273
      %p275 = scmp.eq.s32.totalorder %s274, 0
      %s277 = sadd.s32 %s276, 1
      %s278 = scalar_select %p275, %s276, %s277
      %p281 = pneg %p275
      %p282 = scmp.eq.s32.totalorder %s26, 7
      %p283 = por %p281, %p282
      %p284 = scmp.ne.s32.totalorder %s276, %s279
      %p285 = scmp.eq.s32.totalorder %s26, 0
      %p286 = por %p284, %p285
      %p287 = scmp.ne.s32.totalorder %s276, %s279
      %p288 = scmp.eq.s32.totalorder %s31, 7
      %p289 = por %p287, %p288
      %p290 = scmp.ne.s32.totalorder %s279, %s280
      %p291 = scmp.eq.s32.totalorder %s31, 0
      %p292 = por %p290, %p291
      %p293 = scmp.ne.s32.totalorder %s279, %s280
      %p294 = scmp.eq.s32.totalorder %s32, 7
      %p295 = por %p293, %p294
      %p297 = scmp.ne.s32.totalorder %s280, %s296
      %p298 = scmp.eq.s32.totalorder %s32, 0
      %p299 = por %p297, %p298
      %p300 = scmp.le.s32.totalorder 1, %s26
      %p301 = scmp.lt.s32.totalorder %s26, 9
      %p302 = pnand %p300, %p301
      %p303 = pneg %p302
      // Predicated region
      $region9: #{tpu_custom_call.1} parent=5 // pred_check
        _
      $region10: #{tpu_custom_call.1} parent=5 // pred_check_branch
        %305 = sbr.rel (%p302) target = $region12
      $region11: #{tpu_custom_call.1} parent=5 // pred_region
        %s306 = ssub.s32 %s26, 1
        // Predicated region
        $region13: #{tpu_custom_call.1} parent=11 // pred_check
          %p307 = pneg %p159
        $region14: #{tpu_custom_call.1} parent=11 // pred_check_branch
          %309 = sbr.rel (%p307) target = $region16
        $region15: #{tpu_custom_call.1} parent=11 // pred_region
          %311 = vsyncadd [#allocation10], 0
          %s312 = sshll.u32 %s3, 4
          %s313 = int_to_ptr.hbm [resolvable:$true] %s312
          %s314 = sshll.u32 [#allocation9], 4
          %s315 = int_to_ptr.vmem [resolvable:$true] %s314
          %320 = dma.hbm_to_vmem [thread:$0]  %s313, 1024, %s315, [#allocation10], 64, 64, 4
        $region16: #{tpu_custom_call.1} parent=11 // pred_fallthru
          _
        // Predicated region
        $region17: #{tpu_custom_call.1} parent=11 // pred_check
          %p321 = pneg %p180
        $region18: #{tpu_custom_call.1} parent=11 // pred_check_branch
          %323 = sbr.rel (%p321) target = $region20
        $region19: #{tpu_custom_call.1} parent=11 // pred_region
          _
        $region20: #{tpu_custom_call.1} parent=11 // pred_fallthru
          _
        // Predicated region
        $region21: #{tpu_custom_call.1} parent=11 // pred_check
          %p324 = pneg %p201
        $region22: #{tpu_custom_call.1} parent=11 // pred_check_branch
          %326 = sbr.rel (%p324) target = $region24
        $region23: #{tpu_custom_call.1} parent=11 // pred_region
          %328 = vsyncadd [#allocation10], 0
          %s329 = sshll.u32 %s5, 4
          %s330 = int_to_ptr.hbm [resolvable:$true] %s329
          %s331 = sshll.u32 [#allocation11], 4
          %s332 = int_to_ptr.vmem [resolvable:$true] %s331
          %337 = dma.hbm_to_vmem [thread:$0]  %s330, 192, %s332, [#allocation10], 64, 64, 4
        $region24: #{tpu_custom_call.1} parent=11 // pred_fallthru
          _
        // Predicated region
        $region25: #{tpu_custom_call.1} parent=11 // pred_check
          %p338 = pneg %p222
        $region26: #{tpu_custom_call.1} parent=11 // pred_check_branch
          %340 = sbr.rel (%p338) target = $region28
        $region27: #{tpu_custom_call.1} parent=11 // pred_region
          _
        $region28: #{tpu_custom_call.1} parent=11 // pred_fallthru
          _
        // Predicated region
        $region29: #{tpu_custom_call.1} parent=11 // pred_check
          %p341 = pneg %p243
        $region30: #{tpu_custom_call.1} parent=11 // pred_check_branch
          %343 = sbr.rel (%p341) target = $region32
        $region31: #{tpu_custom_call.1} parent=11 // pred_region
          %345 = vsyncadd [#allocation13], 0
          %s346 = sshll.u32 %s7, 4
          %s347 = int_to_ptr.hbm [resolvable:$true] %s346
          %s348 = sshll.u32 [#allocation12], 4
          %s349 = int_to_ptr.vmem [resolvable:$true] %s348
          %354 = dma.hbm_to_vmem [thread:$0]  %s347, 1024, %s349, [#allocation13], 64, 64, 4
        $region32: #{tpu_custom_call.1} parent=11 // pred_fallthru
          _
        // Predicated region
        $region33: #{tpu_custom_call.1} parent=11 // pred_check
          %p355 = pneg %p264
        $region34: #{tpu_custom_call.1} parent=11 // pred_check_branch
          %357 = sbr.rel (%p355) target = $region36
        $region35: #{tpu_custom_call.1} parent=11 // pred_region
          _
        $region36: #{tpu_custom_call.1} parent=11 // pred_fallthru
          _
      $region12: #{tpu_custom_call.1} parent=5 // pred_fallthru
        _
      %p358 = scmp.lt.s32.totalorder %s26, 8
      // Predicated region
      $region37: #{tpu_custom_call.1} parent=5 // pred_check
        %p359 = pneg %p358
      $region38: #{tpu_custom_call.1} parent=5 // pred_check_branch
        %361 = sbr.rel (%p359) target = $region40
      $region39: #{tpu_custom_call.1} parent=5 // pred_region
        // Predicated region
        $region41: #{tpu_custom_call.1} parent=39 // pred_check
          %p362 = pneg %p68
        $region42: #{tpu_custom_call.1} parent=39 // pred_check_branch
          %364 = sbr.rel (%p362) target = $region44
        $region43: #{tpu_custom_call.1} parent=39 // pred_region
          %s365 = sand.u32 %s58, 1
          %s366 = scalar_lea.sflag [#allocation4], %s365
          %s367 = sand.u32 %s58, 1
          %s368 = smul.addr %s367, 8
          %s369 = scalar_lea.vmem [#allocation3], %s368
          %s370 = smul.u32 %s34, 4
          %s371 = ssub.s32 %s370, 1
          %p372 = scmp.gt.s32.totalorder %s371, 0
          %s373 = scalar_select %p372, %s371, 0
          %375 = vsyncadd %s366, 0
          %s376 = smul.addr %s373, 2
          %s377 = smul.addr %s33, 32
          %s378 = sadd.s32 %s376, %s377
          %s379 = smul.addr %s378, 4
          %s380 = scalar_lea.hbm %s0, %s379
          %s381 = sshll.u32 %s380, 4
          %s382 = int_to_ptr.hbm [resolvable:$true] %s381
          %s383 = sshll.u32 %s369, 4
          %s384 = int_to_ptr.vmem [resolvable:$true] %s383
          %389 = dma.hbm_to_vmem [thread:$0]  %s382, 128, %s384, %s366, 64, 64, 4
        $region44: #{tpu_custom_call.1} parent=39 // pred_fallthru
          _
        // Predicated region
        $region45: #{tpu_custom_call.1} parent=39 // pred_check
          %p390 = pneg %p96
        $region46: #{tpu_custom_call.1} parent=39 // pred_check_branch
          %392 = sbr.rel (%p390) target = $region48
        $region47: #{tpu_custom_call.1} parent=39 // pred_region
          %s393 = sand.u32 %s26, 1
          %s394 = scalar_lea.sflag [#allocation7], %s393
          %s395 = sand.u32 %s86, 1
          %s396 = smul.addr %s395, 32
          %s397 = scalar_lea.vmem [#allocation6], %s396
          %s398 = smul.u32 4, %s34
          %400 = vsyncadd %s394, 0
          %s401 = smul.addr %s398, 2
          %s402 = smul.addr %s33, 32
          %s403 = sadd.s32 %s401, %s402
          %s404 = smul.addr %s403, 4
          %s405 = scalar_lea.hbm %s1, %s404
          %s406 = sshll.u32 %s405, 4
          %s407 = int_to_ptr.hbm [resolvable:$true] %s406
          %s408 = sshll.u32 %s397, 4
          %s409 = int_to_ptr.vmem [resolvable:$true] %s408
          %414 = dma.hbm_to_vmem [thread:$0]  %s407, 512, %s409, %s394, 64, 64, 4
        $region48: #{tpu_custom_call.1} parent=39 // pred_fallthru
          _
        // Predicated region
        $region49: #{tpu_custom_call.1} parent=39 // pred_check
          %p415 = pneg %p132
        $region50: #{tpu_custom_call.1} parent=39 // pred_check_branch
          %417 = sbr.rel (%p415) target = $region52
        $region51: #{tpu_custom_call.1} parent=39 // pred_region
          %s418 = sand.u32 %s26, 1
          %s419 = scalar_lea.sflag [#allocation7], %s418
          %s420 = sand.u32 %s122, 1
          %s421 = smul.addr %s420, 8
          %s422 = scalar_lea.vmem [#allocation8], %s421
          %s423 = sadd.s32 %s34, 1
          %s424 = smul.u32 %s423, 4
          %p425 = scmp.lt.s32.totalorder %s424, 15
          %s426 = scalar_select %p425, %s424, 15
          %428 = vsyncadd %s419, 0
          %s429 = smul.addr %s426, 2
          %s430 = smul.addr %s33, 32
          %s431 = sadd.s32 %s429, %s430
          %s432 = smul.addr %s431, 4
          %s433 = scalar_lea.hbm %s2, %s432
          %s434 = sshll.u32 %s433, 4
          %s435 = int_to_ptr.hbm [resolvable:$true] %s434
          %s436 = sshll.u32 %s422, 4
          %s437 = int_to_ptr.vmem [resolvable:$true] %s436
          %442 = dma.hbm_to_vmem [thread:$0]  %s435, 128, %s437, %s419, 64, 64, 4
        $region52: #{tpu_custom_call.1} parent=39 // pred_fallthru
          _
      $region40: #{tpu_custom_call.1} parent=5 // pred_fallthru
        _
      %p443 = scmp.le.s32.totalorder 1, %s26
      %p444 = scmp.lt.s32.totalorder %s26, 9
      %p445 = pnand %p443, %p444
      %p446 = pneg %p445
      // Predicated region
      $region53: #{tpu_custom_call.1} parent=5 // pred_check
        _
      $region54: #{tpu_custom_call.1} parent=5 // pred_check_branch
        %448 = sbr.rel (%p445) target = $region56
      $region55: #{tpu_custom_call.1} parent=5 // pred_region
        %s449 = ssub.s32 %s26, 1
        %s450 = sand.u32 %s61, 1
        %s451 = scalar_lea.sflag [#allocation4], %s450
        %s452 = sand.u32 %s61, 1
        %s453 = smul.addr %s452, 8
        %s454 = scalar_lea.vmem [#allocation3], %s453
        // Predicated region
        $region57: #{tpu_custom_call.1} parent=55 // pred_check
          %p455 = pneg %p74
        $region58: #{tpu_custom_call.1} parent=55 // pred_check_branch
          %457 = sbr.rel (%p455) target = $region60
        $region59: #{tpu_custom_call.1} parent=55 // pred_region
          %459 = dma.done %s451, 128
        $region60: #{tpu_custom_call.1} parent=55 // pred_fallthru
          _
        %s460 = sand.u32 %s31, 1
        %s461 = scalar_lea.sflag [#allocation7], %s460
        %s462 = sand.u32 %s89, 1
        %s463 = smul.addr %s462, 32
        %s464 = scalar_lea.vmem [#allocation6], %s463
        // Predicated region
        $region61: #{tpu_custom_call.1} parent=55 // pred_check
          %p465 = pneg %p102
        $region62: #{tpu_custom_call.1} parent=55 // pred_check_branch
          %467 = sbr.rel (%p465) target = $region64
        $region63: #{tpu_custom_call.1} parent=55 // pred_region
          %469 = dma.done %s461, 512
        $region64: #{tpu_custom_call.1} parent=55 // pred_fallthru
          _
        %s470 = sand.u32 %s31, 1
        %s471 = scalar_lea.sflag [#allocation7], %s470
        %s472 = sand.u32 %s125, 1
        %s473 = smul.addr %s472, 8
        %s474 = scalar_lea.vmem [#allocation8], %s473
        // Predicated region
        $region65: #{tpu_custom_call.1} parent=55 // pred_check
          %p475 = pneg %p138
        $region66: #{tpu_custom_call.1} parent=55 // pred_check_branch
          %477 = sbr.rel (%p475) target = $region68
        $region67: #{tpu_custom_call.1} parent=55 // pred_region
          %479 = dma.done %s471, 128
        $region68: #{tpu_custom_call.1} parent=55 // pred_fallthru
          _
        // Predicated region
        $region69: #{tpu_custom_call.1} parent=55 // pred_check
          %p480 = pneg %p159
        $region70: #{tpu_custom_call.1} parent=55 // pred_check_branch
          %482 = sbr.rel (%p480) target = $region72
        $region71: #{tpu_custom_call.1} parent=55 // pred_region
          %484 = dma.done [#allocation10], 1024
        $region72: #{tpu_custom_call.1} parent=55 // pred_fallthru
          _
        // Predicated region
        $region73: #{tpu_custom_call.1} parent=55 // pred_check
          %p485 = pneg %p201
        $region74: #{tpu_custom_call.1} parent=55 // pred_check_branch
          %487 = sbr.rel (%p485) target = $region76
        $region75: #{tpu_custom_call.1} parent=55 // pred_region
          %489 = dma.done [#allocation10], 192
        $region76: #{tpu_custom_call.1} parent=55 // pred_fallthru
          _
        // Predicated region
        $region77: #{tpu_custom_call.1} parent=55 // pred_check
          %p490 = pneg %p243
        $region78: #{tpu_custom_call.1} parent=55 // pred_check_branch
          %492 = sbr.rel (%p490) target = $region80
        $region79: #{tpu_custom_call.1} parent=55 // pred_region
          %494 = dma.done [#allocation13], 1024
        $region80: #{tpu_custom_call.1} parent=55 // pred_fallthru
          _
        %s495 = sand.u32 %s61, 1
        %s496 = scalar_lea.sflag [#allocation4], %s495
        %s497 = sand.u32 %s61, 1
        %s498 = smul.addr %s497, 8
        %s499 = scalar_lea.vmem [#allocation3], %s498
        %p500 = pneg %p74
        %p501 = pneg %p71
        %s502 = sand.u32 %s31, 1
        %s503 = scalar_lea.sflag [#allocation7], %s502
        %s504 = sand.u32 %s89, 1
        %s505 = smul.addr %s504, 32
        %s506 = scalar_lea.vmem [#allocation6], %s505
        %p507 = pneg %p102
        %p508 = pneg %p99
        %s509 = sand.u32 %s31, 1
        %s510 = scalar_lea.sflag [#allocation7], %s509
        %s511 = sand.u32 %s125, 1
        %s512 = smul.addr %s511, 8
        %s513 = scalar_lea.vmem [#allocation8], %s512
        %p514 = pneg %p138
        %p515 = pneg %p135
        %p516 = pneg %p159
        %p517 = pneg %p156
        %p518 = pneg %p180
        %p519 = pneg %p177
        %p520 = pneg %p201
        %p521 = pneg %p198
        %p522 = pneg %p222
        %p523 = pneg %p219
        %p524 = pneg %p243
        %p525 = pneg %p240
        %p526 = pneg %p264
        %p527 = pneg %p261
        %p528 = pneg %p292
        %p529 = pneg %p289
        %s530 = sand.u32 %s279, 1
        %s531 = scalar_lea.sflag [#allocation5], %s530
        %s532 = sand.u32 %s279, 1
        %s533 = smul.addr %s532, 32
        %s534 = scalar_lea.vmem [#allocation14], %s533
        %s535 = smul.u32 %s36, 4
        %s536 = ssub.s32 %s535, 1
        %p537 = scmp.gt.s32.totalorder %s536, 0
        %s538 = scalar_select %p537, %s536, 0
        %s539 = smul.u32 4, %s36
        %s540 = sadd.s32 %s36, 1
        %s541 = smul.u32 %s540, 4
        %p542 = scmp.lt.s32.totalorder %s541, 15
        %s543 = scalar_select %p542, %s541, 15
        %s544 = smul.u32 4, %s36
        %v546 = vld [vmem:[%s454] sm:$0xf]
        %v547 = vld [vmem:[%s454 + $0x4] sm:$0xf]
        %v548 = vld [vmem:[%s464] sm:$0xf]
        %v549 = vld [vmem:[%s464 + $0x4] sm:$0xf]
        %v550 = vld [vmem:[%s464 + $0x8] sm:$0xf]
        %v551 = vld [vmem:[%s464 + $0xc] sm:$0xf]
        %v552 = vld [vmem:[%s464 + $0x10] sm:$0xf]
        %v553 = vld [vmem:[%s464 + $0x14] sm:$0xf]
        %v554 = vld [vmem:[%s464 + $0x18] sm:$0xf]
        %v555 = vld [vmem:[%s464 + $0x1c] sm:$0xf]
        %v556 = vld [vmem:[%s474] sm:$0xf]
        %v557 = vld [vmem:[%s474 + $0x4] sm:$0xf]
        %v558 = vld [vmem:[#allocation9] sm:$0xf]
        %v559 = vld [vmem:[#allocation9 + $0x4] sm:$0xf]
        %v560 = vld [vmem:[#allocation9 + $0x8] sm:$0xf]
        %v561 = vld [vmem:[#allocation9 + $0xc] sm:$0xf]
        %v562 = vld [vmem:[#allocation9 + $0x10] sm:$0xf]
        %v563 = vld [vmem:[#allocation9 + $0x14] sm:$0xf]
        %v564 = vld [vmem:[#allocation9 + $0x18] sm:$0xf]
        %v565 = vld [vmem:[#allocation9 + $0x1c] sm:$0xf]
        %v566 = vld [vmem:[#allocation9 + $0x20] sm:$0xf]
        %v567 = vld [vmem:[#allocation9 + $0x24] sm:$0xf]
        %v568 = vld [vmem:[#allocation9 + $0x28] sm:$0xf]
        %v569 = vld [vmem:[#allocation9 + $0x2c] sm:$0xf]
        %v570 = vld [vmem:[#allocation9 + $0x30] sm:$0xf]
        %v571 = vld [vmem:[#allocation9 + $0x34] sm:$0xf]
        %v572 = vld [vmem:[#allocation9 + $0x38] sm:$0xf]
        %v573 = vld [vmem:[#allocation9 + $0x3c] sm:$0xf]
        %v574 = vld [vmem:[%s4] sm:$0x1]
        %v576 = vperm.slane %v574, 0
        %v590 = vunpack.c.l.b16 %v546
        %v591 = vunpack.c.l.b16 %v547
        %v592 = vunpack.c.l.b16 %v548
        %v593 = vunpack.c.l.b16 %v549
        %v594 = vunpack.c.l.b16 %v550
        %v595 = vunpack.c.l.b16 %v551
        %v596 = vunpack.c.l.b16 %v552
        %v597 = vunpack.c.l.b16 %v553
        %v598 = vunpack.c.l.b16 %v554
        %v599 = vunpack.c.l.b16 %v555
        %v600 = vunpack.c.l.b16 %v556
        %v601 = vunpack.c.l.b16 %v557
        %v602 = vpack.c.b16 %v591, %v590
        %v603 = vpack.c.b16 %v593, %v592
        %v604 = vpack.c.b16 %v595, %v594
        %v605 = vpack.c.b16 %v597, %v596
        %v606 = vpack.c.b16 %v599, %v598
        %v607 = vpack.c.b16 %v601, %v600
        %v630 = vunpack.c.l.b16 %v558
        %v631 = vunpack.c.l.b16 %v559
        %v632 = vunpack.c.l.b16 %v560
        %v633 = vunpack.c.l.b16 %v561
        %v634 = vunpack.c.l.b16 %v562
        %v635 = vunpack.c.l.b16 %v563
        %v636 = vunpack.c.l.b16 %v564
        %v637 = vunpack.c.l.b16 %v565
        %v638 = vunpack.c.l.b16 %v566
        %v639 = vunpack.c.l.b16 %v567
        %v640 = vunpack.c.l.b16 %v568
        %v641 = vunpack.c.l.b16 %v569
        %v642 = vunpack.c.l.b16 %v570
        %v643 = vunpack.c.l.b16 %v571
        %v644 = vunpack.c.l.b16 %v572
        %v645 = vunpack.c.l.b16 %v573
        %v646 = vpack.c.b16 %v631, %v630
        %v647 = vpack.c.b16 %v633, %v632
        %v648 = vpack.c.b16 %v635, %v634
        %v649 = vpack.c.b16 %v637, %v636
        %v650 = vpack.c.b16 %v639, %v638
        %v651 = vpack.c.b16 %v641, %v640
        %v652 = vpack.c.b16 %v643, %v642
        %v653 = vpack.c.b16 %v645, %v644
        %662 = vmatpush.bf16.msra.mxu0 %v653
        %663 = vmatpush.bf16.msra.mxu0 %v652
        %664 = vmatpush.bf16.msra.mxu0 %v651
        %665 = vmatpush.bf16.msra.mxu0 %v650
        %666 = vmatpush.bf16.msra.mxu0 %v649
        %667 = vmatpush.bf16.msra.mxu0 %v648
        %668 = vmatpush.bf16.msra.mxu0 %v647
        %669 = vmatpush.bf16.msra.mxu0 %v646
        %670 = vmatmul.bf16.gmra.mxu0 %v602
        %v671 = vpop.f32.mrf.mxu0
        %v672 = vadd.f32 %v576, %v671
        %v673 = vpop.f32.mrf.mxu0
        %v674 = vadd.f32 %v576, %v673
        %675 = vmatmul.bf16.gmra.mxu0 %v603
        %v676 = vpop.f32.mrf.mxu0
        %v677 = vadd.f32 %v576, %v676
        %v678 = vpop.f32.mrf.mxu0
        %v679 = vadd.f32 %v576, %v678
        %680 = vmatmul.bf16.gmra.mxu0 %v604
        %v681 = vpop.f32.mrf.mxu0
        %v682 = vadd.f32 %v576, %v681
        %v683 = vpop.f32.mrf.mxu0
        %v684 = vadd.f32 %v576, %v683
        %685 = vmatmul.bf16.gmra.mxu0 %v605
        %v686 = vpop.f32.mrf.mxu0
        %v687 = vadd.f32 %v576, %v686
        %v688 = vpop.f32.mrf.mxu0
        %v689 = vadd.f32 %v576, %v688
        %690 = vmatmul.bf16.gmra.mxu0 %v606
        %v691 = vpop.f32.mrf.mxu0
        %v692 = vadd.f32 %v576, %v691
        %v693 = vpop.f32.mrf.mxu0
        %v694 = vadd.f32 %v576, %v693
        %695 = vmatmul.bf16.gmra.mxu0 %v607
        %v696 = vpop.f32.mrf.mxu0
        %v697 = vadd.f32 %v576, %v696
        %v698 = vpop.f32.mrf.mxu0
        %v699 = vadd.f32 %v576, %v698
        %700 = vdwg.mxu0
        %v701 = vmax.f32 %v672, 0.0
        %v702 = vmax.f32 %v674, 0.0
        %v703 = vmax.f32 %v677, 0.0
        %v704 = vmax.f32 %v679, 0.0
        %v705 = vmax.f32 %v682, 0.0
        %v706 = vmax.f32 %v684, 0.0
        %v707 = vmax.f32 %v687, 0.0
        %v708 = vmax.f32 %v689, 0.0
        %v709 = vmax.f32 %v692, 0.0
        %v710 = vmax.f32 %v694, 0.0
        %v711 = vmax.f32 %v697, 0.0
        %v712 = vmax.f32 %v699, 0.0
        %v713 = vmin.f32 %v701, 6.0
        %v714 = vmin.f32 %v702, 6.0
        %v715 = vmin.f32 %v703, 6.0
        %v716 = vmin.f32 %v704, 6.0
        %v717 = vmin.f32 %v705, 6.0
        %v718 = vmin.f32 %v706, 6.0
        %v719 = vmin.f32 %v707, 6.0
        %v720 = vmin.f32 %v708, 6.0
        %v721 = vmin.f32 %v709, 6.0
        %v722 = vmin.f32 %v710, 6.0
        %v723 = vmin.f32 %v711, 6.0
        %v724 = vmin.f32 %v712, 6.0
        %v725 = vpack.c.bf16 %v713, %v713
        %v726 = vpack.c.bf16 %v714, %v714
        %v727 = vpack.c.bf16 %v715, %v715
        %v728 = vpack.c.bf16 %v716, %v716
        %v729 = vpack.c.bf16 %v717, %v717
        %v730 = vpack.c.bf16 %v718, %v718
        %v731 = vpack.c.bf16 %v719, %v719
        %v732 = vpack.c.bf16 %v720, %v720
        %v733 = vpack.c.bf16 %v721, %v721
        %v734 = vpack.c.bf16 %v722, %v722
        %v735 = vpack.c.bf16 %v723, %v723
        %v736 = vpack.c.bf16 %v724, %v724
        %vm737 = vcmask 1040384
        %vm738 = vsmask.f32 256
        %vm739 = vmand %vm737, %vm738
        %v740 = vld [vmem:[#allocation2] sm:$0x1]
        %v741 = vsel %vm739, 0, %v740
        %742 = vst [vmem:[#allocation2] sm:$0x1] %v741
        %v743 = vld [vmem:[#allocation2 + $0xc] sm:$0x1]
        %v744 = vsel %vm739, 0, %v743
        %745 = vst [vmem:[#allocation2 + $0xc] sm:$0x1] %v744
        %v746 = vld [vmem:[#allocation2 + $0x18] sm:$0x1]
        %v747 = vsel %vm739, 0, %v746
        %748 = vst [vmem:[#allocation2 + $0x18] sm:$0x1] %v747
        %v749 = vld [vmem:[#allocation2 + $0x24] sm:$0x1]
        %v750 = vsel %vm739, 0, %v749
        %751 = vst [vmem:[#allocation2 + $0x24] sm:$0x1] %v750
        %v752 = vld [vmem:[#allocation2 + $0x30] sm:$0x1]
        %v753 = vsel %vm739, 0, %v752
        %754 = vst [vmem:[#allocation2 + $0x30] sm:$0x1] %v753
        %v755 = vld [vmem:[#allocation2 + $0x3c] sm:$0x1]
        %v756 = vsel %vm739, 0, %v755
        %757 = vst [vmem:[#allocation2 + $0x3c] sm:$0x1] %v756
        %vm758 = vcmask 1043456
        %vm759 = vsmask.f32 7938
        %vm760 = vmand %vm758, %vm759
        %v761 = vld [vmem:[#allocation2 + $0x8] sm:$0xf]
        %v762 = vsel %vm760, 0, %v761
        %763 = vst [vmem:[#allocation2 + $0x8] sm:$0xf] %v762
        %v764 = vld [vmem:[#allocation2 + $0x14] sm:$0xf]
        %v765 = vsel %vm760, 0, %v764
        %766 = vst [vmem:[#allocation2 + $0x14] sm:$0xf] %v765
        %v767 = vld [vmem:[#allocation2 + $0x20] sm:$0xf]
        %v768 = vsel %vm760, 0, %v767
        %769 = vst [vmem:[#allocation2 + $0x20] sm:$0xf] %v768
        %v770 = vld [vmem:[#allocation2 + $0x2c] sm:$0xf]
        %v771 = vsel %vm760, 0, %v770
        %772 = vst [vmem:[#allocation2 + $0x2c] sm:$0xf] %v771
        %v773 = vld [vmem:[#allocation2 + $0x38] sm:$0xf]
        %v774 = vsel %vm760, 0, %v773
        %775 = vst [vmem:[#allocation2 + $0x38] sm:$0xf] %v774
        %v776 = vld [vmem:[#allocation2 + $0x44] sm:$0xf]
        %v777 = vsel %vm760, 0, %v776
        %778 = vst [vmem:[#allocation2 + $0x44] sm:$0xf] %v777
        %vm779 = vsmask.f32 4368
        %vm780 = vmor %vm738, %vm779
        %v782 = vshrl.u32 %v725, 16
        %v784 = vrot.slane %v782, 7
        %v785 = vshll.u32 %v725, 16
        %v787 = vor.u32 %v784, %v785
        %v788 = vrot.slane %v784, 4
        %v790 = vshrl.u32 %v726, 16
        %v792 = vrot.slane %v790, 7
        %v793 = vshll.u32 %v726, 16
        %v795 = vor.u32 %v792, %v793
        %v796 = vsel %vm780, %v788, %v795
        %v797 = vrot.slane %v792, 4
        %v799 = vshrl.u32 %v727, 16
        %v801 = vrot.slane %v799, 7
        %v802 = vshll.u32 %v727, 16
        %v804 = vor.u32 %v801, %v802
        %v805 = vrot.slane %v801, 4
        %v807 = vshrl.u32 %v728, 16
        %v809 = vrot.slane %v807, 7
        %v810 = vshll.u32 %v728, 16
        %v812 = vor.u32 %v809, %v810
        %v813 = vsel %vm780, %v805, %v812
        %v814 = vrot.slane %v809, 4
        %v816 = vshrl.u32 %v729, 16
        %v818 = vrot.slane %v816, 7
        %v819 = vshll.u32 %v729, 16
        %v821 = vor.u32 %v818, %v819
        %v822 = vrot.slane %v818, 4
        %v824 = vshrl.u32 %v730, 16
        %v826 = vrot.slane %v824, 7
        %v827 = vshll.u32 %v730, 16
        %v829 = vor.u32 %v826, %v827
        %v830 = vsel %vm780, %v822, %v829
        %v831 = vrot.slane %v826, 4
        %v833 = vshrl.u32 %v731, 16
        %v835 = vrot.slane %v833, 7
        %v836 = vshll.u32 %v731, 16
        %v838 = vor.u32 %v835, %v836
        %v839 = vrot.slane %v835, 4
        %v841 = vshrl.u32 %v732, 16
        %v843 = vrot.slane %v841, 7
        %v844 = vshll.u32 %v732, 16
        %v846 = vor.u32 %v843, %v844
        %v847 = vsel %vm780, %v839, %v846
        %v848 = vrot.slane %v843, 4
        %v850 = vshrl.u32 %v733, 16
        %v852 = vrot.slane %v850, 7
        %v853 = vshll.u32 %v733, 16
        %v855 = vor.u32 %v852, %v853
        %v856 = vrot.slane %v852, 4
        %v858 = vshrl.u32 %v734, 16
        %v860 = vrot.slane %v858, 7
        %v861 = vshll.u32 %v734, 16
        %v863 = vor.u32 %v860, %v861
        %v864 = vsel %vm780, %v856, %v863
        %v865 = vrot.slane %v860, 4
        %v867 = vshrl.u32 %v735, 16
        %v869 = vrot.slane %v867, 7
        %v870 = vshll.u32 %v735, 16
        %v872 = vor.u32 %v869, %v870
        %v873 = vrot.slane %v869, 4
        %v875 = vshrl.u32 %v736, 16
        %v877 = vrot.slane %v875, 7
        %v878 = vshll.u32 %v736, 16
        %v880 = vor.u32 %v877, %v878
        %v881 = vsel %vm780, %v873, %v880
        %v882 = vrot.slane %v877, 4
        %v901 = vld [vmem:[#allocation2] sm:$0xf]
        %v902 = vsel %vm760, %v787, %v901
        %903 = vst [vmem:[#allocation2] sm:$0xf] %v902
        %904 = vst [vmem:[#allocation2 + $0x4] sm:$0xf] %v796
        %v905 = vld [vmem:[#allocation2 + $0x8] sm:$0x1]
        %v906 = vsel %vm739, %v797, %v905
        %907 = vst [vmem:[#allocation2 + $0x8] sm:$0x1] %v906
        %v908 = vld [vmem:[#allocation2 + $0xc] sm:$0xf]
        %v909 = vsel %vm760, %v804, %v908
        %910 = vst [vmem:[#allocation2 + $0xc] sm:$0xf] %v909
        %911 = vst [vmem:[#allocation2 + $0x10] sm:$0xf] %v813
        %v912 = vld [vmem:[#allocation2 + $0x14] sm:$0x1]
        %v913 = vsel %vm739, %v814, %v912
        %914 = vst [vmem:[#allocation2 + $0x14] sm:$0x1] %v913
        %v915 = vld [vmem:[#allocation2 + $0x18] sm:$0xf]
        %v916 = vsel %vm760, %v821, %v915
        %917 = vst [vmem:[#allocation2 + $0x18] sm:$0xf] %v916
        %918 = vst [vmem:[#allocation2 + $0x1c] sm:$0xf] %v830
        %v919 = vld [vmem:[#allocation2 + $0x20] sm:$0x1]
        %v920 = vsel %vm739, %v831, %v919
        %921 = vst [vmem:[#allocation2 + $0x20] sm:$0x1] %v920
        %v922 = vld [vmem:[#allocation2 + $0x24] sm:$0xf]
        %v923 = vsel %vm760, %v838, %v922
        %924 = vst [vmem:[#allocation2 + $0x24] sm:$0xf] %v923
        %925 = vst [vmem:[#allocation2 + $0x28] sm:$0xf] %v847
        %v926 = vld [vmem:[#allocation2 + $0x2c] sm:$0x1]
        %v927 = vsel %vm739, %v848, %v926
        %928 = vst [vmem:[#allocation2 + $0x2c] sm:$0x1] %v927
        %v929 = vld [vmem:[#allocation2 + $0x30] sm:$0xf]
        %v930 = vsel %vm760, %v855, %v929
        %931 = vst [vmem:[#allocation2 + $0x30] sm:$0xf] %v930
        %932 = vst [vmem:[#allocation2 + $0x34] sm:$0xf] %v864
        %v933 = vld [vmem:[#allocation2 + $0x38] sm:$0x1]
        %v934 = vsel %vm739, %v865, %v933
        %935 = vst [vmem:[#allocation2 + $0x38] sm:$0x1] %v934
        %v936 = vld [vmem:[#allocation2 + $0x3c] sm:$0xf]
        %v937 = vsel %vm760, %v872, %v936
        %938 = vst [vmem:[#allocation2 + $0x3c] sm:$0xf] %v937
        %939 = vst [vmem:[#allocation2 + $0x40] sm:$0xf] %v881
        %v940 = vld [vmem:[#allocation2 + $0x44] sm:$0x1]
        %v941 = vsel %vm739, %v882, %v940
        %942 = vst [vmem:[#allocation2 + $0x44] sm:$0x1] %v941
        %p943 = scmp.eq.s32.totalorder %s36, 0
        // Predicated region
        $region81: #{tpu_custom_call.1} parent=55 // pred_check
          %p944 = pneg %p943
        $region82: #{tpu_custom_call.1} parent=55 // pred_check_branch
          %946 = sbr.rel (%p944) target = $region84
        $region83: #{tpu_custom_call.1} parent=55 // pred_region
          %947 = vst [vmem:[#allocation2] sm:$0xf] 0
          %948 = vst [vmem:[#allocation2 + $0x4] sm:$0xf] 0
          %949 = vst [vmem:[#allocation2 + $0x8] sm:$0xf] 0
        $region84: #{tpu_custom_call.1} parent=55 // pred_fallthru
          _
        %p950 = scmp.eq.s32.totalorder %s36, 3
        // Predicated region
        $region85: #{tpu_custom_call.1} parent=55 // pred_check
          %p951 = pneg %p950
        $region86: #{tpu_custom_call.1} parent=55 // pred_check_branch
          %953 = sbr.rel (%p951) target = $region88
        $region87: #{tpu_custom_call.1} parent=55 // pred_region
          %s954 = scalar_lea.vmem [#allocation2], 60
          %955 = vst [vmem:[%s954] sm:$0xf] 0
          %956 = vst [vmem:[%s954 + $0x4] sm:$0xf] 0
          %957 = vst [vmem:[%s954 + $0x8] sm:$0xf] 0
        $region88: #{tpu_custom_call.1} parent=55 // pred_fallthru
          _
        %v958 = vld [vmem:[#allocation11] sm:$0x1]
        %v959 = vld [vmem:[#allocation2] sm:$0xf]
        %v960 = vld [vmem:[#allocation2 + $0x4] sm:$0xf]
        %v961 = vld [vmem:[#allocation2 + $0xc] sm:$0xf]
        %v962 = vld [vmem:[#allocation2 + $0x10] sm:$0xf]
        %v963 = vld [vmem:[#allocation2 + $0x18] sm:$0xf]
        %v964 = vld [vmem:[#allocation2 + $0x1c] sm:$0xf]
        %v965 = vld [vmem:[#allocation2 + $0x24] sm:$0xf]
        %v966 = vld [vmem:[#allocation2 + $0x28] sm:$0xf]
        %v967 = vunpack.c.l.bf16 %v959
        %v968 = vunpack.c.l.bf16 %v960
        %v969 = vunpack.c.l.bf16 %v961
        %v970 = vunpack.c.l.bf16 %v962
        %v971 = vunpack.c.l.bf16 %v963
        %v972 = vunpack.c.l.bf16 %v964
        %v973 = vunpack.c.l.bf16 %v965
        %v974 = vunpack.c.l.bf16 %v966
        %v975 = vperm.slane %v958, 0
        %v976 = vmul.f32 %v967, %v975
        %v977 = vmul.f32 %v968, %v975
        %v978 = vmul.f32 %v969, %v975
        %v979 = vmul.f32 %v970, %v975
        %v980 = vmul.f32 %v971, %v975
        %v981 = vmul.f32 %v972, %v975
        %v982 = vmul.f32 %v973, %v975
        %v983 = vmul.f32 %v974, %v975
        %v984 = vadd.f32 %v976, 0.0
        %v985 = vadd.f32 %v977, 0.0
        %v986 = vadd.f32 %v978, 0.0
        %v987 = vadd.f32 %v979, 0.0
        %v988 = vadd.f32 %v980, 0.0
        %v989 = vadd.f32 %v981, 0.0
        %v990 = vadd.f32 %v982, 0.0
        %v991 = vadd.f32 %v983, 0.0
        %v992 = vld [vmem:[#allocation11 + $0x1] sm:$0x1]
        %v993 = vld [vmem:[#allocation2 + $0x8] sm:$0x1]
        %v994 = vld [vmem:[#allocation2 + $0x14] sm:$0x1]
        %v995 = vld [vmem:[#allocation2 + $0x20] sm:$0x1]
        %v996 = vld [vmem:[#allocation2 + $0x2c] sm:$0x1]
        %v997 = vunpack.c.l.bf16 %v993
        %v998 = vunpack.c.l.bf16 %v994
        %v999 = vunpack.c.l.bf16 %v995
        %v1000 = vunpack.c.l.bf16 %v996
        %v1001 = vperm.slane %v992, 0
        %v1002 = vmul.f32 %v967, %v1001
        %v1003 = vmul.f32 %v968, %v1001
        %v1004 = vmul.f32 %v997, %v1001
        %v1005 = vmul.f32 %v969, %v1001
        %v1006 = vmul.f32 %v970, %v1001
        %v1007 = vmul.f32 %v998, %v1001
        %v1008 = vmul.f32 %v971, %v1001
        %v1009 = vmul.f32 %v972, %v1001
        %v1010 = vmul.f32 %v999, %v1001
        %v1011 = vmul.f32 %v973, %v1001
        %v1012 = vmul.f32 %v974, %v1001
        %v1013 = vmul.f32 %v1000, %v1001
        %vm1026 = vcmask 1046528
        %v1027 = vrot.slane %v1002, 1
        %v1028 = vrot.slane %v1003, 1
        %v1029 = vsel %vm1026, %v1027, %v1028
        %v1030 = vrot.slane %v1004, 1
        %v1031 = vsel %vm1026, %v1028, %v1030
        %v1032 = vrot.slane %v1005, 1
        %v1033 = vrot.slane %v1006, 1
        %v1034 = vsel %vm1026, %v1032, %v1033
        %v1035 = vrot.slane %v1007, 1
        %v1036 = vsel %vm1026, %v1033, %v1035
        %v1037 = vrot.slane %v1008, 1
        %v1038 = vrot.slane %v1009, 1
        %v1039 = vsel %vm1026, %v1037, %v1038
        %v1040 = vrot.slane %v1010, 1
        %v1041 = vsel %vm1026, %v1038, %v1040
        %v1042 = vrot.slane %v1011, 1
        %v1043 = vrot.slane %v1012, 1
        %v1044 = vsel %vm1026, %v1042, %v1043
        %v1045 = vrot.slane %v1013, 1
        %v1046 = vsel %vm1026, %v1043, %v1045
        %v1055 = vadd.f32 %v984, %v1029
        %v1056 = vadd.f32 %v985, %v1031
        %v1057 = vadd.f32 %v986, %v1034
        %v1058 = vadd.f32 %v987, %v1036
        %v1059 = vadd.f32 %v988, %v1039
        %v1060 = vadd.f32 %v989, %v1041
        %v1061 = vadd.f32 %v990, %v1044
        %v1062 = vadd.f32 %v991, %v1046
        %v1063 = vld [vmem:[#allocation11 + $0x2] sm:$0x1]
        %v1064 = vld [vmem:[#allocation2] sm:$0xe]
        %v1065 = vld [vmem:[#allocation2 + $0xc] sm:$0xe]
        %v1066 = vld [vmem:[#allocation2 + $0x18] sm:$0xe]
        %v1067 = vld [vmem:[#allocation2 + $0x24] sm:$0xe]
        %v1068 = vunpack.c.l.bf16 %v1064
        %v1069 = vunpack.c.l.bf16 %v1065
        %v1070 = vunpack.c.l.bf16 %v1066
        %v1071 = vunpack.c.l.bf16 %v1067
        %v1072 = vperm.slane %v1063, 0
        %v1073 = vmul.f32 %v1068, %v1072
        %v1074 = vmul.f32 %v968, %v1072
        %v1075 = vmul.f32 %v997, %v1072
        %v1076 = vmul.f32 %v1069, %v1072
        %v1077 = vmul.f32 %v970, %v1072
        %v1078 = vmul.f32 %v998, %v1072
        %v1079 = vmul.f32 %v1070, %v1072
        %v1080 = vmul.f32 %v972, %v1072
        %v1081 = vmul.f32 %v999, %v1072
        %v1082 = vmul.f32 %v1071, %v1072
        %v1083 = vmul.f32 %v974, %v1072
        %v1084 = vmul.f32 %v1000, %v1072
        %vm1097 = vcmask 1045504
        %v1098 = vrot.slane %v1073, 2
        %v1099 = vrot.slane %v1074, 2
        %v1100 = vsel %vm1097, %v1098, %v1099
        %v1101 = vrot.slane %v1075, 2
        %v1102 = vsel %vm1097, %v1099, %v1101
        %v1103 = vrot.slane %v1076, 2
        %v1104 = vrot.slane %v1077, 2
        %v1105 = vsel %vm1097, %v1103, %v1104
        %v1106 = vrot.slane %v1078, 2
        %v1107 = vsel %vm1097, %v1104, %v1106
        %v1108 = vrot.slane %v1079, 2
        %v1109 = vrot.slane %v1080, 2
        %v1110 = vsel %vm1097, %v1108, %v1109
        %v1111 = vrot.slane %v1081, 2
        %v1112 = vsel %vm1097, %v1109, %v1111
        %v1113 = vrot.slane %v1082, 2
        %v1114 = vrot.slane %v1083, 2
        %v1115 = vsel %vm1097, %v1113, %v1114
        %v1116 = vrot.slane %v1084, 2
        %v1117 = vsel %vm1097, %v1114, %v1116
        %v1126 = vadd.f32 %v1055, %v1100
        %v1127 = vadd.f32 %v1056, %v1102
        %v1128 = vadd.f32 %v1057, %v1105
        %v1129 = vadd.f32 %v1058, %v1107
        %v1130 = vadd.f32 %v1059, %v1110
        %v1131 = vadd.f32 %v1060, %v1112
        %v1132 = vadd.f32 %v1061, %v1115
        %v1133 = vadd.f32 %v1062, %v1117
        %s1134 = scalar_lea.vmem [#allocation11], 4
        %v1135 = vld [vmem:[%s1134] sm:$0x1]
        %s1136 = scalar_lea.vmem [#allocation2], 12
        %v1137 = vld [vmem:[%s1136] sm:$0xf]
        %v1138 = vld [vmem:[%s1136 + $0x4] sm:$0xf]
        %v1139 = vld [vmem:[%s1136 + $0xc] sm:$0xf]
        %v1140 = vld [vmem:[%s1136 + $0x10] sm:$0xf]
        %v1141 = vld [vmem:[%s1136 + $0x18] sm:$0xf]
        %v1142 = vld [vmem:[%s1136 + $0x1c] sm:$0xf]
        %v1143 = vld [vmem:[%s1136 + $0x24] sm:$0xf]
        %v1144 = vld [vmem:[%s1136 + $0x28] sm:$0xf]
        %v1145 = vunpack.c.l.bf16 %v1137
        %v1146 = vunpack.c.l.bf16 %v1138
        %v1147 = vunpack.c.l.bf16 %v1139
        %v1148 = vunpack.c.l.bf16 %v1140
        %v1149 = vunpack.c.l.bf16 %v1141
        %v1150 = vunpack.c.l.bf16 %v1142
        %v1151 = vunpack.c.l.bf16 %v1143
        %v1152 = vunpack.c.l.bf16 %v1144
        %v1153 = vperm.slane %v1135, 0
        %v1154 = vmul.f32 %v1145, %v1153
        %v1155 = vmul.f32 %v1146, %v1153
        %v1156 = vmul.f32 %v1147, %v1153
        %v1157 = vmul.f32 %v1148, %v1153
        %v1158 = vmul.f32 %v1149, %v1153
        %v1159 = vmul.f32 %v1150, %v1153
        %v1160 = vmul.f32 %v1151, %v1153
        %v1161 = vmul.f32 %v1152, %v1153
        %v1162 = vadd.f32 %v1126, %v1154
        %v1163 = vadd.f32 %v1127, %v1155
        %v1164 = vadd.f32 %v1128, %v1156
        %v1165 = vadd.f32 %v1129, %v1157
        %v1166 = vadd.f32 %v1130, %v1158
        %v1167 = vadd.f32 %v1131, %v1159
        %v1168 = vadd.f32 %v1132, %v1160
        %v1169 = vadd.f32 %v1133, %v1161
        %v1170 = vld [vmem:[%s1134 + $0x1] sm:$0x1]
        %v1171 = vld [vmem:[%s1136 + $0x8] sm:$0x1]
        %v1172 = vld [vmem:[%s1136 + $0x14] sm:$0x1]
        %v1173 = vld [vmem:[%s1136 + $0x20] sm:$0x1]
        %v1174 = vld [vmem:[%s1136 + $0x2c] sm:$0x1]
        %v1175 = vunpack.c.l.bf16 %v1171
        %v1176 = vunpack.c.l.bf16 %v1172
        %v1177 = vunpack.c.l.bf16 %v1173
        %v1178 = vunpack.c.l.bf16 %v1174
        %v1179 = vperm.slane %v1170, 0
        %v1180 = vmul.f32 %v1145, %v1179
        %v1181 = vmul.f32 %v1146, %v1179
        %v1182 = vmul.f32 %v1175, %v1179
        %v1183 = vmul.f32 %v1147, %v1179
        %v1184 = vmul.f32 %v1148, %v1179
        %v1185 = vmul.f32 %v1176, %v1179
        %v1186 = vmul.f32 %v1149, %v1179
        %v1187 = vmul.f32 %v1150, %v1179
        %v1188 = vmul.f32 %v1177, %v1179
        %v1189 = vmul.f32 %v1151, %v1179
        %v1190 = vmul.f32 %v1152, %v1179
        %v1191 = vmul.f32 %v1178, %v1179
        %v1204 = vrot.slane %v1180, 1
        %v1205 = vrot.slane %v1181, 1
        %v1206 = vsel %vm1026, %v1204, %v1205
        %v1207 = vrot.slane %v1182, 1
        %v1208 = vsel %vm1026, %v1205, %v1207
        %v1209 = vrot.slane %v1183, 1
        %v1210 = vrot.slane %v1184, 1
        %v1211 = vsel %vm1026, %v1209, %v1210
        %v1212 = vrot.slane %v1185, 1
        %v1213 = vsel %vm1026, %v1210, %v1212
        %v1214 = vrot.slane %v1186, 1
        %v1215 = vrot.slane %v1187, 1
        %v1216 = vsel %vm1026, %v1214, %v1215
        %v1217 = vrot.slane %v1188, 1
        %v1218 = vsel %vm1026, %v1215, %v1217
        %v1219 = vrot.slane %v1189, 1
        %v1220 = vrot.slane %v1190, 1
        %v1221 = vsel %vm1026, %v1219, %v1220
        %v1222 = vrot.slane %v1191, 1
        %v1223 = vsel %vm1026, %v1220, %v1222
        %v1232 = vadd.f32 %v1162, %v1206
        %v1233 = vadd.f32 %v1163, %v1208
        %v1234 = vadd.f32 %v1164, %v1211
        %v1235 = vadd.f32 %v1165, %v1213
        %v1236 = vadd.f32 %v1166, %v1216
        %v1237 = vadd.f32 %v1167, %v1218
        %v1238 = vadd.f32 %v1168, %v1221
        %v1239 = vadd.f32 %v1169, %v1223
        %v1240 = vld [vmem:[%s1134 + $0x2] sm:$0x1]
        %v1241 = vld [vmem:[%s1136] sm:$0xe]
        %v1242 = vld [vmem:[%s1136 + $0xc] sm:$0xe]
        %v1243 = vld [vmem:[%s1136 + $0x18] sm:$0xe]
        %v1244 = vld [vmem:[%s1136 + $0x24] sm:$0xe]
        %v1245 = vunpack.c.l.bf16 %v1241
        %v1246 = vunpack.c.l.bf16 %v1242
        %v1247 = vunpack.c.l.bf16 %v1243
        %v1248 = vunpack.c.l.bf16 %v1244
        %v1249 = vperm.slane %v1240, 0
        %v1250 = vmul.f32 %v1245, %v1249
        %v1251 = vmul.f32 %v1146, %v1249
        %v1252 = vmul.f32 %v1175, %v1249
        %v1253 = vmul.f32 %v1246, %v1249
        %v1254 = vmul.f32 %v1148, %v1249
        %v1255 = vmul.f32 %v1176, %v1249
        %v1256 = vmul.f32 %v1247, %v1249
        %v1257 = vmul.f32 %v1150, %v1249
        %v1258 = vmul.f32 %v1177, %v1249
        %v1259 = vmul.f32 %v1248, %v1249
        %v1260 = vmul.f32 %v1152, %v1249
        %v1261 = vmul.f32 %v1178, %v1249
        %v1274 = vrot.slane %v1250, 2
        %v1275 = vrot.slane %v1251, 2
        %v1276 = vsel %vm1097, %v1274, %v1275
        %v1277 = vrot.slane %v1252, 2
        %v1278 = vsel %vm1097, %v1275, %v1277
        %v1279 = vrot.slane %v1253, 2
        %v1280 = vrot.slane %v1254, 2
        %v1281 = vsel %vm1097, %v1279, %v1280
        %v1282 = vrot.slane %v1255, 2
        %v1283 = vsel %vm1097, %v1280, %v1282
        %v1284 = vrot.slane %v1256, 2
        %v1285 = vrot.slane %v1257, 2
        %v1286 = vsel %vm1097, %v1284, %v1285
        %v1287 = vrot.slane %v1258, 2
        %v1288 = vsel %vm1097, %v1285, %v1287
        %v1289 = vrot.slane %v1259, 2
        %v1290 = vrot.slane %v1260, 2
        %v1291 = vsel %vm1097, %v1289, %v1290
        %v1292 = vrot.slane %v1261, 2
        %v1293 = vsel %vm1097, %v1290, %v1292
        %v1302 = vadd.f32 %v1232, %v1276
        %v1303 = vadd.f32 %v1233, %v1278
        %v1304 = vadd.f32 %v1234, %v1281
        %v1305 = vadd.f32 %v1235, %v1283
        %v1306 = vadd.f32 %v1236, %v1286
        %v1307 = vadd.f32 %v1237, %v1288
        %v1308 = vadd.f32 %v1238, %v1291
        %v1309 = vadd.f32 %v1239, %v1293
        %s1310 = scalar_lea.vmem [#allocation11], 8
        %v1311 = vld [vmem:[%s1310] sm:$0x1]
        %s1312 = scalar_lea.vmem [#allocation2], 24
        %v1313 = vld [vmem:[%s1312] sm:$0xf]
        %v1314 = vld [vmem:[%s1312 + $0x4] sm:$0xf]
        %v1315 = vld [vmem:[%s1312 + $0xc] sm:$0xf]
        %v1316 = vld [vmem:[%s1312 + $0x10] sm:$0xf]
        %v1317 = vld [vmem:[%s1312 + $0x18] sm:$0xf]
        %v1318 = vld [vmem:[%s1312 + $0x1c] sm:$0xf]
        %v1319 = vld [vmem:[%s1312 + $0x24] sm:$0xf]
        %v1320 = vld [vmem:[%s1312 + $0x28] sm:$0xf]
        %v1321 = vunpack.c.l.bf16 %v1313
        %v1322 = vunpack.c.l.bf16 %v1314
        %v1323 = vunpack.c.l.bf16 %v1315
        %v1324 = vunpack.c.l.bf16 %v1316
        %v1325 = vunpack.c.l.bf16 %v1317
        %v1326 = vunpack.c.l.bf16 %v1318
        %v1327 = vunpack.c.l.bf16 %v1319
        %v1328 = vunpack.c.l.bf16 %v1320
        %v1329 = vperm.slane %v1311, 0
        %v1330 = vmul.f32 %v1321, %v1329
        %v1331 = vmul.f32 %v1322, %v1329
        %v1332 = vmul.f32 %v1323, %v1329
        %v1333 = vmul.f32 %v1324, %v1329
        %v1334 = vmul.f32 %v1325, %v1329
        %v1335 = vmul.f32 %v1326, %v1329
        %v1336 = vmul.f32 %v1327, %v1329
        %v1337 = vmul.f32 %v1328, %v1329
        %v1338 = vadd.f32 %v1302, %v1330
        %v1339 = vadd.f32 %v1303, %v1331
        %v1340 = vadd.f32 %v1304, %v1332
        %v1341 = vadd.f32 %v1305, %v1333
        %v1342 = vadd.f32 %v1306, %v1334
        %v1343 = vadd.f32 %v1307, %v1335
        %v1344 = vadd.f32 %v1308, %v1336
        %v1345 = vadd.f32 %v1309, %v1337
        %v1346 = vld [vmem:[%s1310 + $0x1] sm:$0x1]
        %v1347 = vld [vmem:[%s1312 + $0x8] sm:$0x1]
        %v1348 = vld [vmem:[%s1312 + $0x14] sm:$0x1]
        %v1349 = vld [vmem:[%s1312 + $0x20] sm:$0x1]
        %v1350 = vld [vmem:[%s1312 + $0x2c] sm:$0x1]
        %v1351 = vunpack.c.l.bf16 %v1347
        %v1352 = vunpack.c.l.bf16 %v1348
        %v1353 = vunpack.c.l.bf16 %v1349
        %v1354 = vunpack.c.l.bf16 %v1350
        %v1355 = vperm.slane %v1346, 0
        %v1356 = vmul.f32 %v1321, %v1355
        %v1357 = vmul.f32 %v1322, %v1355
        %v1358 = vmul.f32 %v1351, %v1355
        %v1359 = vmul.f32 %v1323, %v1355
        %v1360 = vmul.f32 %v1324, %v1355
        %v1361 = vmul.f32 %v1352, %v1355
        %v1362 = vmul.f32 %v1325, %v1355
        %v1363 = vmul.f32 %v1326, %v1355
        %v1364 = vmul.f32 %v1353, %v1355
        %v1365 = vmul.f32 %v1327, %v1355
        %v1366 = vmul.f32 %v1328, %v1355
        %v1367 = vmul.f32 %v1354, %v1355
        %v1380 = vrot.slane %v1356, 1
        %v1381 = vrot.slane %v1357, 1
        %v1382 = vsel %vm1026, %v1380, %v1381
        %v1383 = vrot.slane %v1358, 1
        %v1384 = vsel %vm1026, %v1381, %v1383
        %v1385 = vrot.slane %v1359, 1
        %v1386 = vrot.slane %v1360, 1
        %v1387 = vsel %vm1026, %v1385, %v1386
        %v1388 = vrot.slane %v1361, 1
        %v1389 = vsel %vm1026, %v1386, %v1388
        %v1390 = vrot.slane %v1362, 1
        %v1391 = vrot.slane %v1363, 1
        %v1392 = vsel %vm1026, %v1390, %v1391
        %v1393 = vrot.slane %v1364, 1
        %v1394 = vsel %vm1026, %v1391, %v1393
        %v1395 = vrot.slane %v1365, 1
        %v1396 = vrot.slane %v1366, 1
        %v1397 = vsel %vm1026, %v1395, %v1396
        %v1398 = vrot.slane %v1367, 1
        %v1399 = vsel %vm1026, %v1396, %v1398
        %v1408 = vadd.f32 %v1338, %v1382
        %v1409 = vadd.f32 %v1339, %v1384
        %v1410 = vadd.f32 %v1340, %v1387
        %v1411 = vadd.f32 %v1341, %v1389
        %v1412 = vadd.f32 %v1342, %v1392
        %v1413 = vadd.f32 %v1343, %v1394
        %v1414 = vadd.f32 %v1344, %v1397
        %v1415 = vadd.f32 %v1345, %v1399
        %v1416 = vld [vmem:[%s1310 + $0x2] sm:$0x1]
        %v1417 = vld [vmem:[%s1312] sm:$0xe]
        %v1418 = vld [vmem:[%s1312 + $0xc] sm:$0xe]
        %v1419 = vld [vmem:[%s1312 + $0x18] sm:$0xe]
        %v1420 = vld [vmem:[%s1312 + $0x24] sm:$0xe]
        %v1421 = vunpack.c.l.bf16 %v1417
        %v1422 = vunpack.c.l.bf16 %v1418
        %v1423 = vunpack.c.l.bf16 %v1419
        %v1424 = vunpack.c.l.bf16 %v1420
        %v1425 = vperm.slane %v1416, 0
        %v1426 = vmul.f32 %v1421, %v1425
        %v1427 = vmul.f32 %v1322, %v1425
        %v1428 = vmul.f32 %v1351, %v1425
        %v1429 = vmul.f32 %v1422, %v1425
        %v1430 = vmul.f32 %v1324, %v1425
        %v1431 = vmul.f32 %v1352, %v1425
        %v1432 = vmul.f32 %v1423, %v1425
        %v1433 = vmul.f32 %v1326, %v1425
        %v1434 = vmul.f32 %v1353, %v1425
        %v1435 = vmul.f32 %v1424, %v1425
        %v1436 = vmul.f32 %v1328, %v1425
        %v1437 = vmul.f32 %v1354, %v1425
        %v1450 = vrot.slane %v1426, 2
        %v1451 = vrot.slane %v1427, 2
        %v1452 = vsel %vm1097, %v1450, %v1451
        %v1453 = vrot.slane %v1428, 2
        %v1454 = vsel %vm1097, %v1451, %v1453
        %v1455 = vrot.slane %v1429, 2
        %v1456 = vrot.slane %v1430, 2
        %v1457 = vsel %vm1097, %v1455, %v1456
        %v1458 = vrot.slane %v1431, 2
        %v1459 = vsel %vm1097, %v1456, %v1458
        %v1460 = vrot.slane %v1432, 2
        %v1461 = vrot.slane %v1433, 2
        %v1462 = vsel %vm1097, %v1460, %v1461
        %v1463 = vrot.slane %v1434, 2
        %v1464 = vsel %vm1097, %v1461, %v1463
        %v1465 = vrot.slane %v1435, 2
        %v1466 = vrot.slane %v1436, 2
        %v1467 = vsel %vm1097, %v1465, %v1466
        %v1468 = vrot.slane %v1437, 2
        %v1469 = vsel %vm1097, %v1466, %v1468
        %v1478 = vadd.f32 %v1408, %v1452
        %v1479 = vadd.f32 %v1409, %v1454
        %v1480 = vadd.f32 %v1410, %v1457
        %v1481 = vadd.f32 %v1411, %v1459
        %v1482 = vadd.f32 %v1412, %v1462
        %v1483 = vadd.f32 %v1413, %v1464
        %v1484 = vadd.f32 %v1414, %v1467
        %v1485 = vadd.f32 %v1415, %v1469
        %v1486 = vld [vmem:[%s6] sm:$0x1]
        %v1488 = vperm.slane %v1486, 0
        %v1490 = vadd.f32 %v1478, %v1488
        %v1491 = vadd.f32 %v1479, %v1488
        %v1492 = vadd.f32 %v1480, %v1488
        %v1493 = vadd.f32 %v1481, %v1488
        %v1494 = vadd.f32 %v1482, %v1488
        %v1495 = vadd.f32 %v1483, %v1488
        %v1496 = vadd.f32 %v1484, %v1488
        %v1497 = vadd.f32 %v1485, %v1488
        %v1498 = vmax.f32 %v1490, 0.0
        %v1499 = vmax.f32 %v1491, 0.0
        %v1500 = vmax.f32 %v1492, 0.0
        %v1501 = vmax.f32 %v1493, 0.0
        %v1502 = vmax.f32 %v1494, 0.0
        %v1503 = vmax.f32 %v1495, 0.0
        %v1504 = vmax.f32 %v1496, 0.0
        %v1505 = vmax.f32 %v1497, 0.0
        %v1506 = vmin.f32 %v1498, 6.0
        %v1507 = vmin.f32 %v1499, 6.0
        %v1508 = vmin.f32 %v1500, 6.0
        %v1509 = vmin.f32 %v1501, 6.0
        %v1510 = vmin.f32 %v1502, 6.0
        %v1511 = vmin.f32 %v1503, 6.0
        %v1512 = vmin.f32 %v1504, 6.0
        %v1513 = vmin.f32 %v1505, 6.0
        %v1514 = vpack.c.bf16 %v1507, %v1506
        %v1515 = vpack.c.bf16 %v1509, %v1508
        %v1516 = vpack.c.bf16 %v1511, %v1510
        %v1517 = vpack.c.bf16 %v1513, %v1512
        %v1518 = vld [vmem:[#allocation12] sm:$0xf]
        %v1519 = vld [vmem:[#allocation12 + $0x4] sm:$0xf]
        %v1520 = vld [vmem:[#allocation12 + $0x8] sm:$0xf]
        %v1521 = vld [vmem:[#allocation12 + $0xc] sm:$0xf]
        %v1522 = vld [vmem:[#allocation12 + $0x10] sm:$0xf]
        %v1523 = vld [vmem:[#allocation12 + $0x14] sm:$0xf]
        %v1524 = vld [vmem:[#allocation12 + $0x18] sm:$0xf]
        %v1525 = vld [vmem:[#allocation12 + $0x1c] sm:$0xf]
        %v1526 = vld [vmem:[#allocation12 + $0x20] sm:$0xf]
        %v1527 = vld [vmem:[#allocation12 + $0x24] sm:$0xf]
        %v1528 = vld [vmem:[#allocation12 + $0x28] sm:$0xf]
        %v1529 = vld [vmem:[#allocation12 + $0x2c] sm:$0xf]
        %v1530 = vld [vmem:[#allocation12 + $0x30] sm:$0xf]
        %v1531 = vld [vmem:[#allocation12 + $0x34] sm:$0xf]
        %v1532 = vld [vmem:[#allocation12 + $0x38] sm:$0xf]
        %v1533 = vld [vmem:[#allocation12 + $0x3c] sm:$0xf]
        %v1534 = vld [vmem:[%s8] sm:$0x1]
        %v1536 = vperm.slane %v1534, 0
        %v1554 = vunpack.c.l.b16 %v1518
        %v1555 = vunpack.c.l.b16 %v1519
        %v1556 = vunpack.c.l.b16 %v1520
        %v1557 = vunpack.c.l.b16 %v1521
        %v1558 = vunpack.c.l.b16 %v1522
        %v1559 = vunpack.c.l.b16 %v1523
        %v1560 = vunpack.c.l.b16 %v1524
        %v1561 = vunpack.c.l.b16 %v1525
        %v1562 = vunpack.c.l.b16 %v1526
        %v1563 = vunpack.c.l.b16 %v1527
        %v1564 = vunpack.c.l.b16 %v1528
        %v1565 = vunpack.c.l.b16 %v1529
        %v1566 = vunpack.c.l.b16 %v1530
        %v1567 = vunpack.c.l.b16 %v1531
        %v1568 = vunpack.c.l.b16 %v1532
        %v1569 = vunpack.c.l.b16 %v1533
        %v1570 = vpack.c.b16 %v1555, %v1554
        %v1571 = vpack.c.b16 %v1557, %v1556
        %v1572 = vpack.c.b16 %v1559, %v1558
        %v1573 = vpack.c.b16 %v1561, %v1560
        %v1574 = vpack.c.b16 %v1563, %v1562
        %v1575 = vpack.c.b16 %v1565, %v1564
        %v1576 = vpack.c.b16 %v1567, %v1566
        %v1577 = vpack.c.b16 %v1569, %v1568
        %1586 = vmatpush.bf16.msra.mxu0 %v1577
        %1587 = vmatpush.bf16.msra.mxu0 %v1576
        %1588 = vmatpush.bf16.msra.mxu0 %v1575
        %1589 = vmatpush.bf16.msra.mxu0 %v1574
        %1590 = vmatpush.bf16.msra.mxu0 %v1573
        %1591 = vmatpush.bf16.msra.mxu0 %v1572
        %1592 = vmatpush.bf16.msra.mxu0 %v1571
        %1593 = vmatpush.bf16.msra.mxu0 %v1570
        %1594 = vmatmul.bf16.gmra.mxu0 %v1514
        %v1595 = vpop.f32.mrf.mxu0
        %v1596 = vadd.f32 %v1536, %v1595
        %v1597 = vpop.f32.mrf.mxu0
        %v1598 = vadd.f32 %v1536, %v1597
        %1599 = vmatmul.bf16.gmra.mxu0 %v1515
        %v1600 = vpop.f32.mrf.mxu0
        %v1601 = vadd.f32 %v1536, %v1600
        %v1602 = vpop.f32.mrf.mxu0
        %v1603 = vadd.f32 %v1536, %v1602
        %1604 = vmatmul.bf16.gmra.mxu0 %v1516
        %v1605 = vpop.f32.mrf.mxu0
        %v1606 = vadd.f32 %v1536, %v1605
        %v1607 = vpop.f32.mrf.mxu0
        %v1608 = vadd.f32 %v1536, %v1607
        %1609 = vmatmul.bf16.gmra.mxu0 %v1517
        %v1610 = vpop.f32.mrf.mxu0
        %v1611 = vadd.f32 %v1536, %v1610
        %v1612 = vpop.f32.mrf.mxu0
        %v1613 = vadd.f32 %v1536, %v1612
        %1614 = vdwg.mxu0
        %v1615 = vld [vmem:[%s464] sm:$0xf]
        %v1616 = vld [vmem:[%s464 + $0x4] sm:$0xf]
        %v1617 = vld [vmem:[%s464 + $0x8] sm:$0xf]
        %v1618 = vld [vmem:[%s464 + $0xc] sm:$0xf]
        %v1619 = vld [vmem:[%s464 + $0x10] sm:$0xf]
        %v1620 = vld [vmem:[%s464 + $0x14] sm:$0xf]
        %v1621 = vld [vmem:[%s464 + $0x18] sm:$0xf]
        %v1622 = vld [vmem:[%s464 + $0x1c] sm:$0xf]
        %v1623 = vunpack.c.l.bf16 %v1615
        %v1624 = vunpack.c.l.bf16 %v1616
        %v1625 = vunpack.c.l.bf16 %v1617
        %v1626 = vunpack.c.l.bf16 %v1618
        %v1627 = vunpack.c.l.bf16 %v1619
        %v1628 = vunpack.c.l.bf16 %v1620
        %v1629 = vunpack.c.l.bf16 %v1621
        %v1630 = vunpack.c.l.bf16 %v1622
        %v1631 = vadd.f32 %v1596, %v1623
        %v1632 = vadd.f32 %v1598, %v1624
        %v1633 = vadd.f32 %v1601, %v1625
        %v1634 = vadd.f32 %v1603, %v1626
        %v1635 = vadd.f32 %v1606, %v1627
        %v1636 = vadd.f32 %v1608, %v1628
        %v1637 = vadd.f32 %v1611, %v1629
        %v1638 = vadd.f32 %v1613, %v1630
        %v1639 = vpack.c.bf16 %v1631, %v1631
        %v1640 = vpack.c.bf16 %v1632, %v1632
        %v1641 = vpack.c.bf16 %v1633, %v1633
        %v1642 = vpack.c.bf16 %v1634, %v1634
        %v1643 = vpack.c.bf16 %v1635, %v1635
        %v1644 = vpack.c.bf16 %v1636, %v1636
        %v1645 = vpack.c.bf16 %v1637, %v1637
        %v1646 = vpack.c.bf16 %v1638, %v1638
        %1647 = vst [vmem:[%s534] sm:$0xf] %v1639
        %1648 = vst [vmem:[%s534 + $0x4] sm:$0xf] %v1640
        %1649 = vst [vmem:[%s534 + $0x8] sm:$0xf] %v1641
        %1650 = vst [vmem:[%s534 + $0xc] sm:$0xf] %v1642
        %1651 = vst [vmem:[%s534 + $0x10] sm:$0xf] %v1643
        %1652 = vst [vmem:[%s534 + $0x14] sm:$0xf] %v1644
        %1653 = vst [vmem:[%s534 + $0x18] sm:$0xf] %v1645
        %1654 = vst [vmem:[%s534 + $0x1c] sm:$0xf] %v1646
        %s1655 = sand.u32 %s279, 1
        %s1656 = scalar_lea.sflag [#allocation5], %s1655
        %s1657 = sand.u32 %s279, 1
        %s1658 = smul.addr %s1657, 32
        %s1659 = scalar_lea.vmem [#allocation14], %s1658
        // Predicated region
        $region89: #{tpu_custom_call.1} parent=55 // pred_check
          %p1660 = pneg %p289
        $region90: #{tpu_custom_call.1} parent=55 // pred_check_branch
          %1662 = sbr.rel (%p1660) target = $region92
        $region91: #{tpu_custom_call.1} parent=55 // pred_region
          %s1663 = smul.u32 4, %s36
          %1665 = vsyncadd %s1656, 0
          %s1666 = smul.addr %s1663, 2
          %s1667 = smul.addr %s35, 32
          %s1668 = sadd.s32 %s1666, %s1667
          %s1669 = smul.addr %s1668, 4
          %s1670 = scalar_lea.hbm %s9, %s1669
          %s1671 = sshll.u32 %s1659, 4
          %s1672 = int_to_ptr.vmem [resolvable:$true] %s1671
          %s1673 = sshll.u32 %s1670, 4
          %s1674 = int_to_ptr.hbm [resolvable:$true] %s1673
          %1679 = dma.vmem_to_hbm [thread:$0]  %s1672, 512, %s1674, %s1656, 64, 64, 4
        $region92: #{tpu_custom_call.1} parent=55 // pred_fallthru
          _
      $region56: #{tpu_custom_call.1} parent=5 // pred_fallthru
        _
      %p1680 = scmp.le.s32.totalorder 2, %s26
      // Predicated region
      $region93: #{tpu_custom_call.1} parent=5 // pred_check
        %p1681 = pneg %p1680
      $region94: #{tpu_custom_call.1} parent=5 // pred_check_branch
        %1683 = sbr.rel (%p1681) target = $region96
      $region95: #{tpu_custom_call.1} parent=5 // pred_region
        %s1684 = ssub.s32 %s26, 2
        // Predicated region
        $region97: #{tpu_custom_call.1} parent=95 // pred_check
          %p1685 = pneg %p295
        $region98: #{tpu_custom_call.1} parent=95 // pred_check_branch
          %1687 = sbr.rel (%p1685) target = $region100
        $region99: #{tpu_custom_call.1} parent=95 // pred_region
          %s1688 = sand.u32 %s280, 1
          %s1689 = scalar_lea.sflag [#allocation5], %s1688
          %s1690 = sand.u32 %s280, 1
          %s1691 = smul.addr %s1690, 32
          %s1692 = scalar_lea.vmem [#allocation14], %s1691
          %1694 = dma.done %s1689, 512
        $region100: #{tpu_custom_call.1} parent=95 // pred_fallthru
          _
      $region96: #{tpu_custom_call.1} parent=5 // pred_fallthru
        _
    $region6: #{tpu_custom_call.1} parent=1 // loop_footer
      %s30 = sadd.s32 1, %s26
    $region7: #{tpu_custom_call.1} parent=1 // loop_footer_branch
      %25 = sbr.rel target = $region3
    $region8: #{tpu_custom_call.1} parent=1 // loop_exit
      _
    %1695 = vsyncpa [#allocation4], 1
    %s1696 = scalar_lea.sflag [#allocation4], 1
    %1697 = vsyncpa %s1696, 1
    %1698 = vsyncpa [#allocation7], 1
    %s1699 = scalar_lea.sflag [#allocation7], 1
    %1700 = vsyncpa %s1699, 1
    %1701 = vsyncpa [#allocation10], 1
    %1702 = vsyncpa [#allocation13], 1
    %1703 = vsyncpa [#allocation5], 1
    %s1704 = scalar_lea.sflag [#allocation5], 1
    %1705 = vsyncpa %s1704, 1

</llo_original>
